<compile_context>
chip_gen: v5e
topology: v5e:2x2
jax: 0.10.0
libtpu: 0.0.40
codegen_flags: <defaults>
</compile_context>

<pallas_src>
import functools

import jax
import jax.numpy as jnp
from jax.experimental import pallas as pl
from jax.experimental.pallas import tpu as pltpu

_LANES = 128
_SUBLANES = 8
_PIX_ALIGN = _LANES * _SUBLANES  # 1024-pixel (one f32 vreg) alignment


def _dice_ce_stats_kernel(pred_ref, tgt_ref,
                          inter_ref, psum_ref, tcnt_ref, ce_ref,
                          inter_s, psum_s, tcnt_s, ce_s,
                          *, num_classes, rows_tile, tiles_per_split,
                          full_tiles, hw, mask_possible):
    C = num_classes
    s = pl.program_id(0)
    j = pl.program_id(2)
    tile_idx = s * tiles_per_split + j

    @pl.when(j == 0)
    def _init():
        inter_s[...] = jnp.zeros_like(inter_s)
        psum_s[...] = jnp.zeros_like(psum_s)
        tcnt_s[...] = jnp.zeros_like(tcnt_s)
        ce_s[...] = jnp.zeros_like(ce_s)

    groups = rows_tile // _SUBLANES

    def fold8(x):
        # (rows_tile, 128) -> (8, 128): vreg-aligned elementwise adds (VPU only);
        # the single cross-lane reduce happens in the JAX epilogue.
        return jnp.sum(x.reshape(groups, _SUBLANES, _LANES), axis=0)

    def accumulate(masked):
        tgt = tgt_ref[0, 0]                                      # (R, 128) int32
        xs = [pred_ref[0, c].astype(jnp.float32) for c in range(C)]

        if masked:
            r = jax.lax.broadcasted_iota(jnp.int32, (rows_tile, _LANES), 0)
            l = jax.lax.broadcasted_iota(jnp.int32, (rows_tile, _LANES), 1)
            pix = (tile_idx * rows_tile + r) * _LANES + l
            valid = pix < hw
            validf = valid.astype(jnp.float32)
            xs = [jnp.where(valid, x, 0.0) for x in xs]          # scrub OOB garbage

        # Softmax over classes: each class is a separate (R,128) slab, so the
        # max / sum over C is plain elementwise VPU work (no sublane reductions).
        m = xs[0]
        for x in xs[1:]:
            m = jnp.maximum(m, x)
        es = [jnp.exp(x - m) for x in xs]
        denom = es[0]
        for e in es[1:]:
            denom = denom + e
        inv = pl.reciprocal(denom, approx=False)   # one recip + C muls, not C divides
        ps = [e * inv for e in es]

        hots = [(tgt == c).astype(jnp.float32) for c in range(C)]
        if masked:
            hots = [h * validf for h in hots]      # OOB target may alias a real class

        lse = m + jnp.log(denom)
        logit_t = xs[0] * hots[0]
        hot_sum = hots[0]
        for c in range(1, C):
            logit_t = logit_t + xs[c] * hots[c]
            hot_sum = hot_sum + hots[c]
        ce_pix = (lse * hot_sum - logit_t) if masked else (lse - logit_t)

        for c in range(C):
            lo, hi = c * _SUBLANES, (c + 1) * _SUBLANES
            inter_s[lo:hi] += fold8(ps[c] * hots[c])       # one-hot already masked
            pm = ps[c] * validf if masked else ps[c]
            psum_s[lo:hi] += fold8(pm)
            tcnt_s[lo:hi] += fold8(hots[c])
        ce_s[...] += fold8(ce_pix)

    if mask_possible:
        @pl.when(tile_idx < full_tiles)
        def _fast():
            accumulate(False)

        @pl.when(tile_idx >= full_tiles)
        def _ragged():
            accumulate(True)
    else:
        accumulate(False)

    @pl.when(j == tiles_per_split - 1)
    def _finalize():
        inter_ref[0, 0] = inter_s[...]
        psum_ref[0, 0] = psum_s[...]
        tcnt_ref[0, 0] = tcnt_s[...]
        ce_ref[0, 0] = ce_s[...]


def _vmem_capacity_bytes():
    try:
        info = pltpu.get_tpu_info()
        cap = getattr(info, "vmem_capacity_bytes", None)
        if cap:
            return int(cap)
    except Exception:
        pass
    return 64 * 1024 * 1024  # conservative (v7x-sized) fallback


def dice_cross_entropy_loss(pred, target, *, alpha=0.5, num_classes=3,
                            smooth=1.0, max_rows=None, num_splits=None,
                            vmem_limit_bytes=None):
    """pred: (N, C, H, W) float logits; target: (N, H, W) int class ids.

    Returns alpha * multiclass_dice_loss + (1 - alpha) * cross_entropy_loss,
    matching the PyTorch DiceCrossEntropyLoss.forward.
    """
    N, C, H, W = pred.shape
    assert C == num_classes
    hw = H * W

    vmem_cap = _vmem_capacity_bytes()
    big_vmem = vmem_cap >= (100 << 20)            # v5e/v6e (128 MiB) vs v7x (64 MiB)
    if max_rows is None:
        max_rows = 4096 if big_vmem else 2048     # 512K / 256K pixels per step
    if vmem_limit_bytes is None:
        vmem_limit_bytes = (64 << 20) if big_vmem else (24 << 20)

    # Free layout-preserving views when hw % 1024 == 0 (typical seg shapes);
    # otherwise pad the pixel axis once (fallback copy) and mask in-kernel.
    hw_pad = ((hw + _PIX_ALIGN - 1) // _PIX_ALIGN) * _PIX_ALIGN
    x = pred.reshape(N, C, hw)
    t = target.reshape(N, 1, hw).astype(jnp.int32)
    if hw_pad != hw:
        x = jnp.pad(x, ((0, 0), (0, 0), (0, hw_pad - hw)))
        t = jnp.pad(t, ((0, 0), (0, 0), (0, hw_pad - hw)))
    total_rows = hw_pad // _LANES                 # multiple of 8
    x = x.reshape(N, C, total_rows, _LANES)
    t = t.reshape(N, 1, total_rows, _LANES)

    rows_tile = min(total_rows, max_rows)         # multiple of 8 by construction
    num_row_tiles = pl.cdiv(total_rows, rows_tile)

    if num_splits is None:
        # Keep both v7x TensorCores busy when the batch alone splits unevenly
        # (no-op / negligible cost on single-TC v5e/v6e).
        num_splits = 2 if (N % 2 == 1 and num_row_tiles >= 2) else 1
    tiles_per_split = pl.cdiv(num_row_tiles, num_splits)

    tile_pix = rows_tile * _LANES
    full_tiles = hw // tile_pix                   # tiles before this are fully valid
    covered = num_splits * tiles_per_split * tile_pix
    mask_possible = covered > hw

    kernel = functools.partial(
        _dice_ce_stats_kernel, num_classes=C, rows_tile=rows_tile,
        tiles_per_split=tiles_per_split, full_tiles=full_tiles, hw=hw,
        mask_possible=mask_possible)

    last_block = num_row_tiles - 1

    def in_map(s, n, j):
        # Clamp over-covering tiles to the last valid row-block; their
        # contribution is fully masked out in-kernel.
        return (n, 0, jnp.minimum(s * tiles_per_split + j, last_block), 0)

    def out_map(s, n, j):
        return (s, n, 0, 0)

    S = num_splits
    out_shapes = (
        jax.ShapeDtypeStruct((S, N, C * _SUBLANES, _LANES), jnp.float32),  # inter
        jax.ShapeDtypeStruct((S, N, C * _SUBLANES, _LANES), jnp.float32),  # sum(p)
        jax.ShapeDtypeStruct((S, N, C * _SUBLANES, _LANES), jnp.float32),  # class count
        jax.ShapeDtypeStruct((S, N, _SUBLANES, _LANES), jnp.float32),      # CE partials
    )
    stat_spec = pl.BlockSpec((1, 1, C * _SUBLANES, _LANES), out_map)
    ce_spec = pl.BlockSpec((1, 1, _SUBLANES, _LANES), out_map)

    inter, psum, tcnt, ce = pl.pallas_call(
        kernel,
        out_shape=out_shapes,
        grid_spec=pltpu.PrefetchScalarGridSpec(
            num_scalar_prefetch=0,
            grid=(S, N, tiles_per_split),
            in_specs=[
                pl.BlockSpec((1, C, rows_tile, _LANES), in_map),
                pl.BlockSpec((1, 1, rows_tile, _LANES), in_map),
            ],
            out_specs=(stat_spec, stat_spec, stat_spec, ce_spec),
            scratch_shapes=[
                pltpu.VMEM((C * _SUBLANES, _LANES), jnp.float32),
                pltpu.VMEM((C * _SUBLANES, _LANES), jnp.float32),
                pltpu.VMEM((C * _SUBLANES, _LANES), jnp.float32),
                pltpu.VMEM((_SUBLANES, _LANES), jnp.float32),
            ]),
        compiler_params=pltpu.CompilerParams(
            dimension_semantics=("parallel", "parallel", "arbitrary"),
            vmem_limit_bytes=vmem_limit_bytes),
    )(x, t)

    # Tiny scalar epilogue in plain JAX (single cross-lane reduce per stat).
    inter_c = jnp.sum(inter.reshape(S, N, C, -1), axis=(0, 1, 3))   # (C,)
    psum_c = jnp.sum(psum.reshape(S, N, C, -1), axis=(0, 1, 3))     # (C,)
    tcnt_c = jnp.sum(tcnt.reshape(S, N, C, -1), axis=(0, 1, 3))     # (C,)
    ce_sum = jnp.sum(ce)

    dice = (2.0 * inter_c + smooth) / (psum_c + tcnt_c + smooth)
    dice_loss = jnp.sum(1.0 - dice) / num_classes
    ce_loss = ce_sum / (N * hw)
    return alpha * dice_loss + (1.0 - alpha) * ce_loss


def _reference(pred, target, alpha=0.5, num_classes=3, smooth=1.0):
    p = jax.nn.softmax(pred, axis=1)
    total = 0.0
    for cls in range(num_classes):
        pc = p[:, cls]
        tc = (target == cls).astype(jnp.float32)
        inter = jnp.sum(pc * tc)
        union = jnp.sum(pc) + jnp.sum(tc)
        dice = (2.0 * inter + smooth) / (union + smooth)
        total = total + (1.0 - dice)
    dice_loss = total / num_classes

    logp = jax.nn.log_softmax(pred, axis=1)
    nll = -jnp.take_along_axis(logp, target[:, None, :, :], axis=1)[:, 0]
    ce_loss = jnp.mean(nll)
    return alpha * dice_loss + (1.0 - alpha) * ce_loss


if __name__ == "__main__":
    key = jax.random.PRNGKey(0)
    k1, k2 = jax.random.split(key)
    N, C, H, W = 2, 3, 16, 16
    pred = jax.random.normal(k1, (N, C, H, W), dtype=jnp.float32)
    target = jax.random.randint(k2, (N, H, W), 0, C, dtype=jnp.int32)

    loss = dice_cross_entropy_loss(pred, target, alpha=0.5,
                                   num_classes=C, smooth=1.0)
    loss = jax.block_until_ready(loss)

    ref = _reference(pred, target, alpha=0.5, num_classes=C, smooth=1.0)
    assert jnp.allclose(loss, ref, rtol=2e-5, atol=2e-5), (loss, ref)
    print("KERNEL_OK")
</pallas_src>

<mosaic_0001>
module attributes {stable_mosaic.version = 11 : i64} {
  func.func @_dice_ce_stats_kernel(%arg0: i32, %arg1: i32, %arg2: i32, %arg3: memref<1x3x8x128xf32, #tpu.memory_space<vmem>>, %arg4: memref<1x1x8x128xi32, #tpu.memory_space<vmem>>, %arg5: memref<1x1x24x128xf32, #tpu.memory_space<vmem>>, %arg6: memref<1x1x24x128xf32, #tpu.memory_space<vmem>>, %arg7: memref<1x1x24x128xf32, #tpu.memory_space<vmem>>, %arg8: memref<1x1x8x128xf32, #tpu.memory_space<vmem>>, %arg9: memref<24x128xf32, #tpu.memory_space<vmem>>, %arg10: memref<24x128xf32, #tpu.memory_space<vmem>>, %arg11: memref<24x128xf32, #tpu.memory_space<vmem>>, %arg12: memref<8x128xf32, #tpu.memory_space<vmem>>) attributes {dimension_semantics = [#tpu.dimension_semantics<parallel>, #tpu.dimension_semantics<parallel>, #tpu.dimension_semantics<arbitrary>], iteration_bounds = array<i64: 1, 2, 1>, scalar_prefetch = 0 : i64, scratch_operands = 4 : i64, tpu.core_type = #tpu.core_type<tc>, window_params = [{transform_indices = @transform_0, window_bounds = array<i64: 1, 3, 8, 128>}, {transform_indices = @transform_1, window_bounds = array<i64: 1, 1, 8, 128>}, {transform_indices = @transform_2, window_bounds = array<i64: 1, 1, 24, 128>}, {transform_indices = @transform_3, window_bounds = array<i64: 1, 1, 24, 128>}, {transform_indices = @transform_4, window_bounds = array<i64: 1, 1, 24, 128>}, {transform_indices = @transform_5, window_bounds = array<i64: 1, 1, 8, 128>}]} {
    %c1_i32 = arith.constant 1 : i32
    %0 = arith.muli %arg0, %c1_i32 : i32
    %1 = arith.addi %0, %arg2 : i32
    %c0_i32 = arith.constant 0 : i32
    %2 = arith.cmpi eq, %arg2, %c0_i32 : i32
    %3 = arith.extui %2 : i1 to i32
    %c0_i32_0 = arith.constant 0 : i32
    %4 = arith.cmpi ne, %3, %c0_i32_0 : i32
    scf.if %4 {
      %cst = arith.constant 0.000000e+00 : f32
      %14 = vector.broadcast %cst : f32 to vector<24x128xf32>
      %c0 = arith.constant 0 : index
      %c0_7 = arith.constant 0 : index
      %15 = vector.load %arg9[%c0, %c0_7] : memref<24x128xf32, #tpu.memory_space<vmem>>, vector<24x128xf32>
      tpu.vector_store %arg9[%c0, %c0_7], %14 {strides = array<i32>} : memref<24x128xf32, #tpu.memory_space<vmem>>, vector<24x128xf32>,
      %cst_8 = arith.constant 0.000000e+00 : f32
      %16 = vector.broadcast %cst_8 : f32 to vector<24x128xf32>
      %c0_9 = arith.constant 0 : index
      %c0_10 = arith.constant 0 : index
      %17 = vector.load %arg10[%c0_9, %c0_10] : memref<24x128xf32, #tpu.memory_space<vmem>>, vector<24x128xf32>
      tpu.vector_store %arg10[%c0_9, %c0_10], %16 {strides = array<i32>} : memref<24x128xf32, #tpu.memory_space<vmem>>, vector<24x128xf32>,
      %cst_11 = arith.constant 0.000000e+00 : f32
      %18 = vector.broadcast %cst_11 : f32 to vector<24x128xf32>
      %c0_12 = arith.constant 0 : index
      %c0_13 = arith.constant 0 : index
      %19 = vector.load %arg11[%c0_12, %c0_13] : memref<24x128xf32, #tpu.memory_space<vmem>>, vector<24x128xf32>
      tpu.vector_store %arg11[%c0_12, %c0_13], %18 {strides = array<i32>} : memref<24x128xf32, #tpu.memory_space<vmem>>, vector<24x128xf32>,
      %cst_14 = arith.constant 0.000000e+00 : f32
      %20 = vector.broadcast %cst_14 : f32 to vector<8x128xf32>
      %c0_15 = arith.constant 0 : index
      %c0_16 = arith.constant 0 : index
      %21 = vector.load %arg12[%c0_15, %c0_16] : memref<8x128xf32, #tpu.memory_space<vmem>>, vector<8x128xf32>
      tpu.vector_store %arg12[%c0_15, %c0_16], %20 {strides = array<i32>} : memref<8x128xf32, #tpu.memory_space<vmem>>, vector<8x128xf32>,
    } else {
    }
    %c0_i32_1 = arith.constant 0 : i32
    %5 = arith.cmpi slt, %1, %c0_i32_1 : i32
    %6 = arith.extui %5 : i1 to i32
    %c0_i32_2 = arith.constant 0 : i32
    %7 = arith.cmpi ne, %6, %c0_i32_2 : i32
    scf.if %7 {
      %c0 = arith.constant 0 : index
      %c0_7 = arith.constant 0 : index
      %c0_8 = arith.constant 0 : index
      %c0_9 = arith.constant 0 : index
      %14 = vector.load %arg4[%c0, %c0_7, %c0_8, %c0_9] : memref<1x1x8x128xi32, #tpu.memory_space<vmem>>, vector<1x1x8x128xi32>
      %15 = vector.shape_cast %14 : vector<1x1x8x128xi32> to vector<8x128xi32>
      %c0_10 = arith.constant 0 : index
      %c0_11 = arith.constant 0 : index
      %c0_12 = arith.constant 0 : index
      %c0_13 = arith.constant 0 : index
      %16 = vector.load %arg3[%c0_10, %c0_11, %c0_12, %c0_13] : memref<1x3x8x128xf32, #tpu.memory_space<vmem>>, vector<1x1x8x128xf32>
      %17 = vector.shape_cast %16 : vector<1x1x8x128xf32> to vector<8x128xf32>
      %c0_14 = arith.constant 0 : index
      %c1 = arith.constant 1 : index
      %c0_15 = arith.constant 0 : index
      %c0_16 = arith.constant 0 : index
      %18 = vector.load %arg3[%c0_14, %c1, %c0_15, %c0_16] : memref<1x3x8x128xf32, #tpu.memory_space<vmem>>, vector<1x1x8x128xf32>
      %19 = vector.shape_cast %18 : vector<1x1x8x128xf32> to vector<8x128xf32>
      %c0_17 = arith.constant 0 : index
      %c2 = arith.constant 2 : index
      %c0_18 = arith.constant 0 : index
      %c0_19 = arith.constant 0 : index
      %20 = vector.load %arg3[%c0_17, %c2, %c0_18, %c0_19] : memref<1x3x8x128xf32, #tpu.memory_space<vmem>>, vector<1x1x8x128xf32>
      %21 = vector.shape_cast %20 : vector<1x1x8x128xf32> to vector<8x128xf32>
      %22 = arith.maximumf %17, %19 : vector<8x128xf32>
      %23 = arith.maximumf %22, %21 : vector<8x128xf32>
      %24 = arith.subf %17, %23 : vector<8x128xf32>
      %25 = math.exp %24 : vector<8x128xf32>
      %26 = arith.subf %19, %23 : vector<8x128xf32>
      %27 = math.exp %26 : vector<8x128xf32>
      %28 = arith.subf %21, %23 : vector<8x128xf32>
      %29 = math.exp %28 : vector<8x128xf32>
      %30 = arith.addf %25, %27 : vector<8x128xf32>
      %31 = arith.addf %30, %29 : vector<8x128xf32>
      %32 = tpu.reciprocal %31 : vector<8x128xf32> -> vector<8x128xf32>
      %33 = arith.mulf %25, %32 : vector<8x128xf32>
      %34 = arith.mulf %27, %32 : vector<8x128xf32>
      %35 = arith.mulf %29, %32 : vector<8x128xf32>
      %c0_i32_20 = arith.constant 0 : i32
      %36 = vector.broadcast %c0_i32_20 : i32 to vector<8x128xi32>
      %37 = arith.cmpi eq, %15, %36 : vector<8x128xi32>
      %38 = arith.extui %37 : vector<8x128xi1> to vector<8x128xi32>
      %39 = arith.sitofp %38 : vector<8x128xi32> to vector<8x128xf32>
      %c1_i32_21 = arith.constant 1 : i32
      %40 = vector.broadcast %c1_i32_21 : i32 to vector<8x128xi32>
      %41 = arith.cmpi eq, %15, %40 : vector<8x128xi32>
      %42 = arith.extui %41 : vector<8x128xi1> to vector<8x128xi32>
      %43 = arith.sitofp %42 : vector<8x128xi32> to vector<8x128xf32>
      %c2_i32 = arith.constant 2 : i32
      %44 = vector.broadcast %c2_i32 : i32 to vector<8x128xi32>
      %45 = arith.cmpi eq, %15, %44 : vector<8x128xi32>
      %46 = arith.extui %45 : vector<8x128xi1> to vector<8x128xi32>
      %47 = arith.sitofp %46 : vector<8x128xi32> to vector<8x128xf32>
      %48 = math.log %31 : vector<8x128xf32>
      %49 = arith.addf %23, %48 : vector<8x128xf32>
      %50 = arith.mulf %17, %39 : vector<8x128xf32>
      %51 = arith.mulf %19, %43 : vector<8x128xf32>
      %52 = arith.addf %50, %51 : vector<8x128xf32>
      %53 = arith.mulf %21, %47 : vector<8x128xf32>
      %54 = arith.addf %52, %53 : vector<8x128xf32>
      %55 = arith.subf %49, %54 : vector<8x128xf32>
      %c0_22 = arith.constant 0 : index
      %c0_23 = arith.constant 0 : index
      %56 = vector.load %arg9[%c0_22, %c0_23] : memref<24x128xf32, #tpu.memory_space<vmem>>, vector<8x128xf32>
      %57 = arith.mulf %33, %39 : vector<8x128xf32>
      %58 = vector.shape_cast %57 : vector<8x128xf32> to vector<1x8x128xf32>
      %cst = arith.constant dense<0.000000e+00> : vector<8x128xf32>
      %59 = vector.multi_reduction <add>, %58, %cst [0] : vector<1x8x128xf32> to vector<8x128xf32>
      %60 = arith.addf %56, %59 : vector<8x128xf32>
      %c0_24 = arith.constant 0 : index
      %c0_25 = arith.constant 0 : index
      %61 = vector.load %arg9[%c0_24, %c0_25] : memref<24x128xf32, #tpu.memory_space<vmem>>, vector<8x128xf32>
      tpu.vector_store %arg9[%c0_24, %c0_25], %60 {strides = array<i32>} : memref<24x128xf32, #tpu.memory_space<vmem>>, vector<8x128xf32>,
      %c0_26 = arith.constant 0 : index
      %c0_27 = arith.constant 0 : index
      %62 = vector.load %arg10[%c0_26, %c0_27] : memref<24x128xf32, #tpu.memory_space<vmem>>, vector<8x128xf32>
      %63 = vector.shape_cast %33 : vector<8x128xf32> to vector<1x8x128xf32>
      %cst_28 = arith.constant dense<0.000000e+00> : vector<8x128xf32>
      %64 = vector.multi_reduction <add>, %63, %cst_28 [0] : vector<1x8x128xf32> to vector<8x128xf32>
      %65 = arith.addf %62, %64 : vector<8x128xf32>
      %c0_29 = arith.constant 0 : index
      %c0_30 = arith.constant 0 : index
      %66 = vector.load %arg10[%c0_29, %c0_30] : memref<24x128xf32, #tpu.memory_space<vmem>>, vector<8x128xf32>
      tpu.vector_store %arg10[%c0_29, %c0_30], %65 {strides = array<i32>} : memref<24x128xf32, #tpu.memory_space<vmem>>, vector<8x128xf32>,
      %c0_31 = arith.constant 0 : index
      %c0_32 = arith.constant 0 : index
      %67 = vector.load %arg11[%c0_31, %c0_32] : memref<24x128xf32, #tpu.memory_space<vmem>>, vector<8x128xf32>
      %68 = vector.shape_cast %39 : vector<8x128xf32> to vector<1x8x128xf32>
      %cst_33 = arith.constant dense<0.000000e+00> : vector<8x128xf32>
      %69 = vector.multi_reduction <add>, %68, %cst_33 [0] : vector<1x8x128xf32> to vector<8x128xf32>
      %70 = arith.addf %67, %69 : vector<8x128xf32>
      %c0_34 = arith.constant 0 : index
      %c0_35 = arith.constant 0 : index
      %71 = vector.load %arg11[%c0_34, %c0_35] : memref<24x128xf32, #tpu.memory_space<vmem>>, vector<8x128xf32>
      tpu.vector_store %arg11[%c0_34, %c0_35], %70 {strides = array<i32>} : memref<24x128xf32, #tpu.memory_space<vmem>>, vector<8x128xf32>,
      %c8 = arith.constant 8 : index
      %c0_36 = arith.constant 0 : index
      %72 = vector.load %arg9[%c8, %c0_36] : memref<24x128xf32, #tpu.memory_space<vmem>>, vector<8x128xf32>
      %73 = arith.mulf %34, %43 : vector<8x128xf32>
      %74 = vector.shape_cast %73 : vector<8x128xf32> to vector<1x8x128xf32>
      %cst_37 = arith.constant dense<0.000000e+00> : vector<8x128xf32>
      %75 = vector.multi_reduction <add>, %74, %cst_37 [0] : vector<1x8x128xf32> to vector<8x128xf32>
      %76 = arith.addf %72, %75 : vector<8x128xf32>
      %c8_38 = arith.constant 8 : index
      %c0_39 = arith.constant 0 : index
      %77 = vector.load %arg9[%c8_38, %c0_39] : memref<24x128xf32, #tpu.memory_space<vmem>>, vector<8x128xf32>
      tpu.vector_store %arg9[%c8_38, %c0_39], %76 {strides = array<i32>} : memref<24x128xf32, #tpu.memory_space<vmem>>, vector<8x128xf32>,
      %c8_40 = arith.constant 8 : index
      %c0_41 = arith.constant 0 : index
      %78 = vector.load %arg10[%c8_40, %c0_41] : memref<24x128xf32, #tpu.memory_space<vmem>>, vector<8x128xf32>
      %79 = vector.shape_cast %34 : vector<8x128xf32> to vector<1x8x128xf32>
      %cst_42 = arith.constant dense<0.000000e+00> : vector<8x128xf32>
      %80 = vector.multi_reduction <add>, %79, %cst_42 [0] : vector<1x8x128xf32> to vector<8x128xf32>
      %81 = arith.addf %78, %80 : vector<8x128xf32>
      %c8_43 = arith.constant 8 : index
      %c0_44 = arith.constant 0 : index
      %82 = vector.load %arg10[%c8_43, %c0_44] : memref<24x128xf32, #tpu.memory_space<vmem>>, vector<8x128xf32>
      tpu.vector_store %arg10[%c8_43, %c0_44], %81 {strides = array<i32>} : memref<24x128xf32, #tpu.memory_space<vmem>>, vector<8x128xf32>,
      %c8_45 = arith.constant 8 : index
      %c0_46 = arith.constant 0 : index
      %83 = vector.load %arg11[%c8_45, %c0_46] : memref<24x128xf32, #tpu.memory_space<vmem>>, vector<8x128xf32>
      %84 = vector.shape_cast %43 : vector<8x128xf32> to vector<1x8x128xf32>
      %cst_47 = arith.constant dense<0.000000e+00> : vector<8x128xf32>
      %85 = vector.multi_reduction <add>, %84, %cst_47 [0] : vector<1x8x128xf32> to vector<8x128xf32>
      %86 = arith.addf %83, %85 : vector<8x128xf32>
      %c8_48 = arith.constant 8 : index
      %c0_49 = arith.constant 0 : index
      %87 = vector.load %arg11[%c8_48, %c0_49] : memref<24x128xf32, #tpu.memory_space<vmem>>, vector<8x128xf32>
      tpu.vector_store %arg11[%c8_48, %c0_49], %86 {strides = array<i32>} : memref<24x128xf32, #tpu.memory_space<vmem>>, vector<8x128xf32>,
      %c16 = arith.constant 16 : index
      %c0_50 = arith.constant 0 : index
      %88 = vector.load %arg9[%c16, %c0_50] : memref<24x128xf32, #tpu.memory_space<vmem>>, vector<8x128xf32>
      %89 = arith.mulf %35, %47 : vector<8x128xf32>
      %90 = vector.shape_cast %89 : vector<8x128xf32> to vector<1x8x128xf32>
      %cst_51 = arith.constant dense<0.000000e+00> : vector<8x128xf32>
      %91 = vector.multi_reduction <add>, %90, %cst_51 [0] : vector<1x8x128xf32> to vector<8x128xf32>
      %92 = arith.addf %88, %91 : vector<8x128xf32>
      %c16_52 = arith.constant 16 : index
      %c0_53 = arith.constant 0 : index
      %93 = vector.load %arg9[%c16_52, %c0_53] : memref<24x128xf32, #tpu.memory_space<vmem>>, vector<8x128xf32>
      tpu.vector_store %arg9[%c16_52, %c0_53], %92 {strides = array<i32>} : memref<24x128xf32, #tpu.memory_space<vmem>>, vector<8x128xf32>,
      %c16_54 = arith.constant 16 : index
      %c0_55 = arith.constant 0 : index
      %94 = vector.load %arg10[%c16_54, %c0_55] : memref<24x128xf32, #tpu.memory_space<vmem>>, vector<8x128xf32>
      %95 = vector.shape_cast %35 : vector<8x128xf32> to vector<1x8x128xf32>
      %cst_56 = arith.constant dense<0.000000e+00> : vector<8x128xf32>
      %96 = vector.multi_reduction <add>, %95, %cst_56 [0] : vector<1x8x128xf32> to vector<8x128xf32>
      %97 = arith.addf %94, %96 : vector<8x128xf32>
      %c16_57 = arith.constant 16 : index
      %c0_58 = arith.constant 0 : index
      %98 = vector.load %arg10[%c16_57, %c0_58] : memref<24x128xf32, #tpu.memory_space<vmem>>, vector<8x128xf32>
      tpu.vector_store %arg10[%c16_57, %c0_58], %97 {strides = array<i32>} : memref<24x128xf32, #tpu.memory_space<vmem>>, vector<8x128xf32>,
      %c16_59 = arith.constant 16 : index
      %c0_60 = arith.constant 0 : index
      %99 = vector.load %arg11[%c16_59, %c0_60] : memref<24x128xf32, #tpu.memory_space<vmem>>, vector<8x128xf32>
      %100 = vector.shape_cast %47 : vector<8x128xf32> to vector<1x8x128xf32>
      %cst_61 = arith.constant dense<0.000000e+00> : vector<8x128xf32>
      %101 = vector.multi_reduction <add>, %100, %cst_61 [0] : vector<1x8x128xf32> to vector<8x128xf32>
      %102 = arith.addf %99, %101 : vector<8x128xf32>
      %c16_62 = arith.constant 16 : index
      %c0_63 = arith.constant 0 : index
      %103 = vector.load %arg11[%c16_62, %c0_63] : memref<24x128xf32, #tpu.memory_space<vmem>>, vector<8x128xf32>
      tpu.vector_store %arg11[%c16_62, %c0_63], %102 {strides = array<i32>} : memref<24x128xf32, #tpu.memory_space<vmem>>, vector<8x128xf32>,
      %c0_64 = arith.constant 0 : index
      %c0_65 = arith.constant 0 : index
      %104 = vector.load %arg12[%c0_64, %c0_65] : memref<8x128xf32, #tpu.memory_space<vmem>>, vector<8x128xf32>
      %105 = vector.shape_cast %55 : vector<8x128xf32> to vector<1x8x128xf32>
      %cst_66 = arith.constant dense<0.000000e+00> : vector<8x128xf32>
      %106 = vector.multi_reduction <add>, %105, %cst_66 [0] : vector<1x8x128xf32> to vector<8x128xf32>
      %107 = arith.addf %104, %106 : vector<8x128xf32>
      %c0_67 = arith.constant 0 : index
      %c0_68 = arith.constant 0 : index
      %108 = vector.load %arg12[%c0_67, %c0_68] : memref<8x128xf32, #tpu.memory_space<vmem>>, vector<8x128xf32>
      tpu.vector_store %arg12[%c0_67, %c0_68], %107 {strides = array<i32>} : memref<8x128xf32, #tpu.memory_space<vmem>>, vector<8x128xf32>,
    } else {
    }
    %c0_i32_3 = arith.constant 0 : i32
    %8 = arith.cmpi sge, %1, %c0_i32_3 : i32
    %9 = arith.extui %8 : i1 to i32
    %c0_i32_4 = arith.constant 0 : i32
    %10 = arith.cmpi ne, %9, %c0_i32_4 : i32
    scf.if %10 {
      %c0 = arith.constant 0 : index
      %c0_7 = arith.constant 0 : index
      %c0_8 = arith.constant 0 : index
      %c0_9 = arith.constant 0 : index
      %14 = vector.load %arg4[%c0, %c0_7, %c0_8, %c0_9] : memref<1x1x8x128xi32, #tpu.memory_space<vmem>>, vector<1x1x8x128xi32>
      %15 = vector.shape_cast %14 : vector<1x1x8x128xi32> to vector<8x128xi32>
      %c0_10 = arith.constant 0 : index
      %c0_11 = arith.constant 0 : index
      %c0_12 = arith.constant 0 : index
      %c0_13 = arith.constant 0 : index
      %16 = vector.load %arg3[%c0_10, %c0_11, %c0_12, %c0_13] : memref<1x3x8x128xf32, #tpu.memory_space<vmem>>, vector<1x1x8x128xf32>
      %17 = vector.shape_cast %16 : vector<1x1x8x128xf32> to vector<8x128xf32>
      %c0_14 = arith.constant 0 : index
      %c1 = arith.constant 1 : index
      %c0_15 = arith.constant 0 : index
      %c0_16 = arith.constant 0 : index
      %18 = vector.load %arg3[%c0_14, %c1, %c0_15, %c0_16] : memref<1x3x8x128xf32, #tpu.memory_space<vmem>>, vector<1x1x8x128xf32>
      %19 = vector.shape_cast %18 : vector<1x1x8x128xf32> to vector<8x128xf32>
      %c0_17 = arith.constant 0 : index
      %c2 = arith.constant 2 : index
      %c0_18 = arith.constant 0 : index
      %c0_19 = arith.constant 0 : index
      %20 = vector.load %arg3[%c0_17, %c2, %c0_18, %c0_19] : memref<1x3x8x128xf32, #tpu.memory_space<vmem>>, vector<1x1x8x128xf32>
      %21 = vector.shape_cast %20 : vector<1x1x8x128xf32> to vector<8x128xf32>
      %22 = tpu.iota {dimensions = array<i32: 0>} : vector<8x128xi32>
      %23 = tpu.iota {dimensions = array<i32: 1>} : vector<8x128xi32>
      %c8_i32 = arith.constant 8 : i32
      %24 = arith.muli %1, %c8_i32 : i32
      %25 = vector.broadcast %24 : i32 to vector<8x128xi32>
      %26 = arith.addi %25, %22 : vector<8x128xi32>
      %c128_i32 = arith.constant 128 : i32
      %27 = vector.broadcast %c128_i32 : i32 to vector<8x128xi32>
      %28 = arith.muli %26, %27 : vector<8x128xi32>
      %29 = arith.addi %28, %23 : vector<8x128xi32>
      %c256_i32 = arith.constant 256 : i32
      %30 = vector.broadcast %c256_i32 : i32 to vector<8x128xi32>
      %31 = arith.cmpi slt, %29, %30 : vector<8x128xi32>
      %32 = arith.extui %31 : vector<8x128xi1> to vector<8x128xi32>
      %33 = arith.sitofp %32 : vector<8x128xi32> to vector<8x128xf32>
      %cst = arith.constant 0.000000e+00 : f32
      %34 = vector.broadcast %cst : f32 to vector<8x128xf32>
      %35 = arith.select %31, %17, %34 : vector<8x128xi1>, vector<8x128xf32>
      %cst_20 = arith.constant 0.000000e+00 : f32
      %36 = vector.broadcast %cst_20 : f32 to vector<8x128xf32>
      %37 = arith.select %31, %19, %36 : vector<8x128xi1>, vector<8x128xf32>
      %cst_21 = arith.constant 0.000000e+00 : f32
      %38 = vector.broadcast %cst_21 : f32 to vector<8x128xf32>
      %39 = arith.select %31, %21, %38 : vector<8x128xi1>, vector<8x128xf32>
      %40 = arith.maximumf %35, %37 : vector<8x128xf32>
      %41 = arith.maximumf %40, %39 : vector<8x128xf32>
      %42 = arith.subf %35, %41 : vector<8x128xf32>
      %43 = math.exp %42 : vector<8x128xf32>
      %44 = arith.subf %37, %41 : vector<8x128xf32>
      %45 = math.exp %44 : vector<8x128xf32>
      %46 = arith.subf %39, %41 : vector<8x128xf32>
      %47 = math.exp %46 : vector<8x128xf32>
      %48 = arith.addf %43, %45 : vector<8x128xf32>
      %49 = arith.addf %48, %47 : vector<8x128xf32>
      %50 = tpu.reciprocal %49 : vector<8x128xf32> -> vector<8x128xf32>
      %51 = arith.mulf %43, %50 : vector<8x128xf32>
      %52 = arith.mulf %45, %50 : vector<8x128xf32>
      %53 = arith.mulf %47, %50 : vector<8x128xf32>
      %c0_i32_22 = arith.constant 0 : i32
      %54 = vector.broadcast %c0_i32_22 : i32 to vector<8x128xi32>
      %55 = arith.cmpi eq, %15, %54 : vector<8x128xi32>
      %56 = arith.extui %55 : vector<8x128xi1> to vector<8x128xi32>
      %57 = arith.sitofp %56 : vector<8x128xi32> to vector<8x128xf32>
      %c1_i32_23 = arith.constant 1 : i32
      %58 = vector.broadcast %c1_i32_23 : i32 to vector<8x128xi32>
      %59 = arith.cmpi eq, %15, %58 : vector<8x128xi32>
      %60 = arith.extui %59 : vector<8x128xi1> to vector<8x128xi32>
      %61 = arith.sitofp %60 : vector<8x128xi32> to vector<8x128xf32>
      %c2_i32 = arith.constant 2 : i32
      %62 = vector.broadcast %c2_i32 : i32 to vector<8x128xi32>
      %63 = arith.cmpi eq, %15, %62 : vector<8x128xi32>
      %64 = arith.extui %63 : vector<8x128xi1> to vector<8x128xi32>
      %65 = arith.sitofp %64 : vector<8x128xi32> to vector<8x128xf32>
      %66 = arith.mulf %57, %33 : vector<8x128xf32>
      %67 = arith.mulf %61, %33 : vector<8x128xf32>
      %68 = arith.mulf %65, %33 : vector<8x128xf32>
      %69 = math.log %49 : vector<8x128xf32>
      %70 = arith.addf %41, %69 : vector<8x128xf32>
      %71 = arith.mulf %35, %66 : vector<8x128xf32>
      %72 = arith.mulf %37, %67 : vector<8x128xf32>
      %73 = arith.addf %71, %72 : vector<8x128xf32>
      %74 = arith.addf %66, %67 : vector<8x128xf32>
      %75 = arith.mulf %39, %68 : vector<8x128xf32>
      %76 = arith.addf %73, %75 : vector<8x128xf32>
      %77 = arith.addf %74, %68 : vector<8x128xf32>
      %78 = arith.mulf %70, %77 : vector<8x128xf32>
      %79 = arith.subf %78, %76 : vector<8x128xf32>
      %c0_24 = arith.constant 0 : index
      %c0_25 = arith.constant 0 : index
      %80 = vector.load %arg9[%c0_24, %c0_25] : memref<24x128xf32, #tpu.memory_space<vmem>>, vector<8x128xf32>
      %81 = arith.mulf %51, %66 : vector<8x128xf32>
      %82 = vector.shape_cast %81 : vector<8x128xf32> to vector<1x8x128xf32>
      %cst_26 = arith.constant dense<0.000000e+00> : vector<8x128xf32>
      %83 = vector.multi_reduction <add>, %82, %cst_26 [0] : vector<1x8x128xf32> to vector<8x128xf32>
      %84 = arith.addf %80, %83 : vector<8x128xf32>
      %c0_27 = arith.constant 0 : index
      %c0_28 = arith.constant 0 : index
      %85 = vector.load %arg9[%c0_27, %c0_28] : memref<24x128xf32, #tpu.memory_space<vmem>>, vector<8x128xf32>
      tpu.vector_store %arg9[%c0_27, %c0_28], %84 {strides = array<i32>} : memref<24x128xf32, #tpu.memory_space<vmem>>, vector<8x128xf32>,
      %86 = arith.mulf %51, %33 : vector<8x128xf32>
      %c0_29 = arith.constant 0 : index
      %c0_30 = arith.constant 0 : index
      %87 = vector.load %arg10[%c0_29, %c0_30] : memref<24x128xf32, #tpu.memory_space<vmem>>, vector<8x128xf32>
      %88 = vector.shape_cast %86 : vector<8x128xf32> to vector<1x8x128xf32>
      %cst_31 = arith.constant dense<0.000000e+00> : vector<8x128xf32>
      %89 = vector.multi_reduction <add>, %88, %cst_31 [0] : vector<1x8x128xf32> to vector<8x128xf32>
      %90 = arith.addf %87, %89 : vector<8x128xf32>
      %c0_32 = arith.constant 0 : index
      %c0_33 = arith.constant 0 : index
      %91 = vector.load %arg10[%c0_32, %c0_33] : memref<24x128xf32, #tpu.memory_space<vmem>>, vector<8x128xf32>
      tpu.vector_store %arg10[%c0_32, %c0_33], %90 {strides = array<i32>} : memref<24x128xf32, #tpu.memory_space<vmem>>, vector<8x128xf32>,
      %c0_34 = arith.constant 0 : index
      %c0_35 = arith.constant 0 : index
      %92 = vector.load %arg11[%c0_34, %c0_35] : memref<24x128xf32, #tpu.memory_space<vmem>>, vector<8x128xf32>
      %93 = vector.shape_cast %66 : vector<8x128xf32> to vector<1x8x128xf32>
      %cst_36 = arith.constant dense<0.000000e+00> : vector<8x128xf32>
      %94 = vector.multi_reduction <add>, %93, %cst_36 [0] : vector<1x8x128xf32> to vector<8x128xf32>
      %95 = arith.addf %92, %94 : vector<8x128xf32>
      %c0_37 = arith.constant 0 : index
      %c0_38 = arith.constant 0 : index
      %96 = vector.load %arg11[%c0_37, %c0_38] : memref<24x128xf32, #tpu.memory_space<vmem>>, vector<8x128xf32>
      tpu.vector_store %arg11[%c0_37, %c0_38], %95 {strides = array<i32>} : memref<24x128xf32, #tpu.memory_space<vmem>>, vector<8x128xf32>,
      %c8 = arith.constant 8 : index
      %c0_39 = arith.constant 0 : index
      %97 = vector.load %arg9[%c8, %c0_39] : memref<24x128xf32, #tpu.memory_space<vmem>>, vector<8x128xf32>
      %98 = arith.mulf %52, %67 : vector<8x128xf32>
      %99 = vector.shape_cast %98 : vector<8x128xf32> to vector<1x8x128xf32>
      %cst_40 = arith.constant dense<0.000000e+00> : vector<8x128xf32>
      %100 = vector.multi_reduction <add>, %99, %cst_40 [0] : vector<1x8x128xf32> to vector<8x128xf32>
      %101 = arith.addf %97, %100 : vector<8x128xf32>
      %c8_41 = arith.constant 8 : index
      %c0_42 = arith.constant 0 : index
      %102 = vector.load %arg9[%c8_41, %c0_42] : memref<24x128xf32, #tpu.memory_space<vmem>>, vector<8x128xf32>
      tpu.vector_store %arg9[%c8_41, %c0_42], %101 {strides = array<i32>} : memref<24x128xf32, #tpu.memory_space<vmem>>, vector<8x128xf32>,
      %103 = arith.mulf %52, %33 : vector<8x128xf32>
      %c8_43 = arith.constant 8 : index
      %c0_44 = arith.constant 0 : index
      %104 = vector.load %arg10[%c8_43, %c0_44] : memref<24x128xf32, #tpu.memory_space<vmem>>, vector<8x128xf32>
      %105 = vector.shape_cast %103 : vector<8x128xf32> to vector<1x8x128xf32>
      %cst_45 = arith.constant dense<0.000000e+00> : vector<8x128xf32>
      %106 = vector.multi_reduction <add>, %105, %cst_45 [0] : vector<1x8x128xf32> to vector<8x128xf32>
      %107 = arith.addf %104, %106 : vector<8x128xf32>
      %c8_46 = arith.constant 8 : index
      %c0_47 = arith.constant 0 : index
      %108 = vector.load %arg10[%c8_46, %c0_47] : memref<24x128xf32, #tpu.memory_space<vmem>>, vector<8x128xf32>
      tpu.vector_store %arg10[%c8_46, %c0_47], %107 {strides = array<i32>} : memref<24x128xf32, #tpu.memory_space<vmem>>, vector<8x128xf32>,
      %c8_48 = arith.constant 8 : index
      %c0_49 = arith.constant 0 : index
      %109 = vector.load %arg11[%c8_48, %c0_49] : memref<24x128xf32, #tpu.memory_space<vmem>>, vector<8x128xf32>
      %110 = vector.shape_cast %67 : vector<8x128xf32> to vector<1x8x128xf32>
      %cst_50 = arith.constant dense<0.000000e+00> : vector<8x128xf32>
      %111 = vector.multi_reduction <add>, %110, %cst_50 [0] : vector<1x8x128xf32> to vector<8x128xf32>
      %112 = arith.addf %109, %111 : vector<8x128xf32>
      %c8_51 = arith.constant 8 : index
      %c0_52 = arith.constant 0 : index
      %113 = vector.load %arg11[%c8_51, %c0_52] : memref<24x128xf32, #tpu.memory_space<vmem>>, vector<8x128xf32>
      tpu.vector_store %arg11[%c8_51, %c0_52], %112 {strides = array<i32>} : memref<24x128xf32, #tpu.memory_space<vmem>>, vector<8x128xf32>,
      %c16 = arith.constant 16 : index
      %c0_53 = arith.constant 0 : index
      %114 = vector.load %arg9[%c16, %c0_53] : memref<24x128xf32, #tpu.memory_space<vmem>>, vector<8x128xf32>
      %115 = arith.mulf %53, %68 : vector<8x128xf32>
      %116 = vector.shape_cast %115 : vector<8x128xf32> to vector<1x8x128xf32>
      %cst_54 = arith.constant dense<0.000000e+00> : vector<8x128xf32>
      %117 = vector.multi_reduction <add>, %116, %cst_54 [0] : vector<1x8x128xf32> to vector<8x128xf32>
      %118 = arith.addf %114, %117 : vector<8x128xf32>
      %c16_55 = arith.constant 16 : index
      %c0_56 = arith.constant 0 : index
      %119 = vector.load %arg9[%c16_55, %c0_56] : memref<24x128xf32, #tpu.memory_space<vmem>>, vector<8x128xf32>
      tpu.vector_store %arg9[%c16_55, %c0_56], %118 {strides = array<i32>} : memref<24x128xf32, #tpu.memory_space<vmem>>, vector<8x128xf32>,
      %120 = arith.mulf %53, %33 : vector<8x128xf32>
      %c16_57 = arith.constant 16 : index
      %c0_58 = arith.constant 0 : index
      %121 = vector.load %arg10[%c16_57, %c0_58] : memref<24x128xf32, #tpu.memory_space<vmem>>, vector<8x128xf32>
      %122 = vector.shape_cast %120 : vector<8x128xf32> to vector<1x8x128xf32>
      %cst_59 = arith.constant dense<0.000000e+00> : vector<8x128xf32>
      %123 = vector.multi_reduction <add>, %122, %cst_59 [0] : vector<1x8x128xf32> to vector<8x128xf32>
      %124 = arith.addf %121, %123 : vector<8x128xf32>
      %c16_60 = arith.constant 16 : index
      %c0_61 = arith.constant 0 : index
      %125 = vector.load %arg10[%c16_60, %c0_61] : memref<24x128xf32, #tpu.memory_space<vmem>>, vector<8x128xf32>
      tpu.vector_store %arg10[%c16_60, %c0_61], %124 {strides = array<i32>} : memref<24x128xf32, #tpu.memory_space<vmem>>, vector<8x128xf32>,
      %c16_62 = arith.constant 16 : index
      %c0_63 = arith.constant 0 : index
      %126 = vector.load %arg11[%c16_62, %c0_63] : memref<24x128xf32, #tpu.memory_space<vmem>>, vector<8x128xf32>
      %127 = vector.shape_cast %68 : vector<8x128xf32> to vector<1x8x128xf32>
      %cst_64 = arith.constant dense<0.000000e+00> : vector<8x128xf32>
      %128 = vector.multi_reduction <add>, %127, %cst_64 [0] : vector<1x8x128xf32> to vector<8x128xf32>
      %129 = arith.addf %126, %128 : vector<8x128xf32>
      %c16_65 = arith.constant 16 : index
      %c0_66 = arith.constant 0 : index
      %130 = vector.load %arg11[%c16_65, %c0_66] : memref<24x128xf32, #tpu.memory_space<vmem>>, vector<8x128xf32>
      tpu.vector_store %arg11[%c16_65, %c0_66], %129 {strides = array<i32>} : memref<24x128xf32, #tpu.memory_space<vmem>>, vector<8x128xf32>,
      %c0_67 = arith.constant 0 : index
      %c0_68 = arith.constant 0 : index
      %131 = vector.load %arg12[%c0_67, %c0_68] : memref<8x128xf32, #tpu.memory_space<vmem>>, vector<8x128xf32>
      %132 = vector.shape_cast %79 : vector<8x128xf32> to vector<1x8x128xf32>
      %cst_69 = arith.constant dense<0.000000e+00> : vector<8x128xf32>
      %133 = vector.multi_reduction <add>, %132, %cst_69 [0] : vector<1x8x128xf32> to vector<8x128xf32>
      %134 = arith.addf %131, %133 : vector<8x128xf32>
      %c0_70 = arith.constant 0 : index
      %c0_71 = arith.constant 0 : index
      %135 = vector.load %arg12[%c0_70, %c0_71] : memref<8x128xf32, #tpu.memory_space<vmem>>, vector<8x128xf32>
      tpu.vector_store %arg12[%c0_70, %c0_71], %134 {strides = array<i32>} : memref<8x128xf32, #tpu.memory_space<vmem>>, vector<8x128xf32>,
    } else {
    }
    %c0_i32_5 = arith.constant 0 : i32
    %11 = arith.cmpi eq, %arg2, %c0_i32_5 : i32
    %12 = arith.extui %11 : i1 to i32
    %c0_i32_6 = arith.constant 0 : i32
    %13 = arith.cmpi ne, %12, %c0_i32_6 : i32
    scf.if %13 {
      %c0 = arith.constant 0 : index
      %c0_7 = arith.constant 0 : index
      %14 = vector.load %arg9[%c0, %c0_7] : memref<24x128xf32, #tpu.memory_space<vmem>>, vector<24x128xf32>
      %c0_8 = arith.constant 0 : index
      %c0_9 = arith.constant 0 : index
      %c0_10 = arith.constant 0 : index
      %c0_11 = arith.constant 0 : index
      %15 = vector.load %arg5[%c0_8, %c0_9, %c0_10, %c0_11] : memref<1x1x24x128xf32, #tpu.memory_space<vmem>>, vector<1x1x24x128xf32>
      %16 = vector.shape_cast %15 : vector<1x1x24x128xf32> to vector<24x128xf32>
      %17 = vector.shape_cast %14 : vector<24x128xf32> to vector<1x1x24x128xf32>
      tpu.vector_store %arg5[%c0_8, %c0_9, %c0_10, %c0_11], %17 {strides = array<i32>} : memref<1x1x24x128xf32, #tpu.memory_space<vmem>>, vector<1x1x24x128xf32>,
      %c0_12 = arith.constant 0 : index
      %c0_13 = arith.constant 0 : index
      %18 = vector.load %arg10[%c0_12, %c0_13] : memref<24x128xf32, #tpu.memory_space<vmem>>, vector<24x128xf32>
      %c0_14 = arith.constant 0 : index
      %c0_15 = arith.constant 0 : index
      %c0_16 = arith.constant 0 : index
      %c0_17 = arith.constant 0 : index
      %19 = vector.load %arg6[%c0_14, %c0_15, %c0_16, %c0_17] : memref<1x1x24x128xf32, #tpu.memory_space<vmem>>, vector<1x1x24x128xf32>
      %20 = vector.shape_cast %19 : vector<1x1x24x128xf32> to vector<24x128xf32>
      %21 = vector.shape_cast %18 : vector<24x128xf32> to vector<1x1x24x128xf32>
      tpu.vector_store %arg6[%c0_14, %c0_15, %c0_16, %c0_17], %21 {strides = array<i32>} : memref<1x1x24x128xf32, #tpu.memory_space<vmem>>, vector<1x1x24x128xf32>,
      %c0_18 = arith.constant 0 : index
      %c0_19 = arith.constant 0 : index
      %22 = vector.load %arg11[%c0_18, %c0_19] : memref<24x128xf32, #tpu.memory_space<vmem>>, vector<24x128xf32>
      %c0_20 = arith.constant 0 : index
      %c0_21 = arith.constant 0 : index
      %c0_22 = arith.constant 0 : index
      %c0_23 = arith.constant 0 : index
      %23 = vector.load %arg7[%c0_20, %c0_21, %c0_22, %c0_23] : memref<1x1x24x128xf32, #tpu.memory_space<vmem>>, vector<1x1x24x128xf32>
      %24 = vector.shape_cast %23 : vector<1x1x24x128xf32> to vector<24x128xf32>
      %25 = vector.shape_cast %22 : vector<24x128xf32> to vector<1x1x24x128xf32>
      tpu.vector_store %arg7[%c0_20, %c0_21, %c0_22, %c0_23], %25 {strides = array<i32>} : memref<1x1x24x128xf32, #tpu.memory_space<vmem>>, vector<1x1x24x128xf32>,
      %c0_24 = arith.constant 0 : index
      %c0_25 = arith.constant 0 : index
      %26 = vector.load %arg12[%c0_24, %c0_25] : memref<8x128xf32, #tpu.memory_space<vmem>>, vector<8x128xf32>
      %c0_26 = arith.constant 0 : index
      %c0_27 = arith.constant 0 : index
      %c0_28 = arith.constant 0 : index
      %c0_29 = arith.constant 0 : index
      %27 = vector.load %arg8[%c0_26, %c0_27, %c0_28, %c0_29] : memref<1x1x8x128xf32, #tpu.memory_space<vmem>>, vector<1x1x8x128xf32>
      %28 = vector.shape_cast %27 : vector<1x1x8x128xf32> to vector<8x128xf32>
      %29 = vector.shape_cast %26 : vector<8x128xf32> to vector<1x1x8x128xf32>
      tpu.vector_store %arg8[%c0_26, %c0_27, %c0_28, %c0_29], %29 {strides = array<i32>} : memref<1x1x8x128xf32, #tpu.memory_space<vmem>>, vector<1x1x8x128xf32>,
    } else {
    }
    return
  }
  func.func @transform_0(%arg0: i32, %arg1: i32, %arg2: i32) -> (i32, i32, i32, i32) {
    %c1_i32 = arith.constant 1 : i32
    %0 = arith.muli %arg0, %c1_i32 : i32
    %1 = arith.addi %0, %arg2 : i32
    %c0_i32 = arith.constant 0 : i32
    %2 = arith.minsi %1, %c0_i32 : i32
    %c0_i32_0 = arith.constant 0 : i32
    %c0_i32_1 = arith.constant 0 : i32
    %c0_i32_2 = arith.constant 0 : i32
    return %arg1, %c0_i32_0, %2, %c0_i32_1 : i32, i32, i32, i32
  }
  func.func @transform_1(%arg0: i32, %arg1: i32, %arg2: i32) -> (i32, i32, i32, i32) {
    %c1_i32 = arith.constant 1 : i32
    %0 = arith.muli %arg0, %c1_i32 : i32
    %1 = arith.addi %0, %arg2 : i32
    %c0_i32 = arith.constant 0 : i32
    %2 = arith.minsi %1, %c0_i32 : i32
    %c0_i32_0 = arith.constant 0 : i32
    %c0_i32_1 = arith.constant 0 : i32
    %c0_i32_2 = arith.constant 0 : i32
    return %arg1, %c0_i32_0, %2, %c0_i32_1 : i32, i32, i32, i32
  }
  func.func @transform_2(%arg0: i32, %arg1: i32, %arg2: i32) -> (i32, i32, i32, i32) {
    %c0_i32 = arith.constant 0 : i32
    %c0_i32_0 = arith.constant 0 : i32
    %c0_i32_1 = arith.constant 0 : i32
    return %arg0, %arg1, %c0_i32, %c0_i32_0 : i32, i32, i32, i32
  }
  func.func @transform_3(%arg0: i32, %arg1: i32, %arg2: i32) -> (i32, i32, i32, i32) {
    %c0_i32 = arith.constant 0 : i32
    %c0_i32_0 = arith.constant 0 : i32
    %c0_i32_1 = arith.constant 0 : i32
    return %arg0, %arg1, %c0_i32, %c0_i32_0 : i32, i32, i32, i32
  }
  func.func @transform_4(%arg0: i32, %arg1: i32, %arg2: i32) -> (i32, i32, i32, i32) {
    %c0_i32 = arith.constant 0 : i32
    %c0_i32_0 = arith.constant 0 : i32
    %c0_i32_1 = arith.constant 0 : i32
    return %arg0, %arg1, %c0_i32, %c0_i32_0 : i32, i32, i32, i32
  }
  func.func @transform_5(%arg0: i32, %arg1: i32, %arg2: i32) -> (i32, i32, i32, i32) {
    %c0_i32 = arith.constant 0 : i32
    %c0_i32_0 = arith.constant 0 : i32
    %c0_i32_1 = arith.constant 0 : i32
    return %arg0, %arg1, %c0_i32, %c0_i32_0 : i32, i32, i32, i32
  }
}

</mosaic_0001>

<llo_original>
// kernel: tpu_custom_call.1
$region0: #{tpu_custom_call.1}
  #allocation0 [shape = 'u32[]', space=smem, size = 0x4, offset = 0x4, fixed_abs, tag = 'smem constant byte address 0x4 - core index']
  #allocation1 [shape = 'u32[72,128]{1,0:T(1,128)}', space=vmem, size = 0x9000, scoped, tag = 'internal scratch']
  #allocation2 [shape = 'f32[24,128]{1,0:T(8,128)}', space=vmem, size = 0x3000, scoped, tag = 'scratch operand']
  #allocation3 [shape = 'f32[24,128]{1,0:T(8,128)}', space=vmem, size = 0x3000, scoped, tag = 'scratch operand']
  #allocation4 [shape = 'f32[24,128]{1,0:T(8,128)}', space=vmem, size = 0x3000, scoped, tag = 'scratch operand']
  #allocation5 [shape = 'f32[8,128]{1,0:T(8,128)}', space=vmem, size = 0x1000, scoped, tag = 'scratch operand']
  %s0 = inlined_call_operand.hbm [shape: f32[2,3,8,128], index: 0, kind: input, shape index: {}]
  %s1 = inlined_call_operand.hbm [shape: s32[2,1,8,128], index: 1, kind: input, shape index: {}]
  %s2 = inlined_call_operand.hbm [shape: f32[1,2,24,128], index: 2, kind: output, shape index: {0}]
  %s3 = inlined_call_operand.hbm [shape: f32[1,2,24,128], index: 3, kind: output, shape index: {1}]
  %s4 = inlined_call_operand.hbm [shape: f32[1,2,24,128], index: 4, kind: output, shape index: {2}]
  %s5 = inlined_call_operand.hbm [shape: f32[1,2,8,128], index: 5, kind: output, shape index: {3}]
  %6 = xla_tuple %s2, %s3, %s4, %s5
  %s7 = sld [smem:[#allocation0]]
  $region89: #{tpu_custom_call.1} parent=0
    _
  %s9 = ssub.s32 1, %s7
  %s10 = scalar_select 0, %s9, %s7
  $region1: #{tpu_custom_call.1} parent=0
    #allocation6 [shape = 'u8[24576]{0}', space=vmem, size = 0x6000, scoped, tag = 'input window, operand 0']
    #allocation7 [shape = 's32[2]{0}', space=sflag, size = 0x8, scoped, tag = 'scoped memory for tpu_custom_call.1']
    #allocation8 [shape = 's32[2]{0}', space=sflag, size = 0x8, scoped, tag = 'scoped memory for tpu_custom_call.1']
    #allocation9 [shape = 'u8[8192]{0}', space=vmem, size = 0x2000, scoped, tag = 'input window, operand 1']
    #allocation10 [shape = 's32[2]{0}', space=sflag, size = 0x8, scoped, tag = 'scoped memory for tpu_custom_call.1']
    #allocation11 [shape = 'u8[24576]{0}', space=vmem, size = 0x6000, scoped, tag = 'output window, operand 0']
    #allocation12 [shape = 'u8[24576]{0}', space=vmem, size = 0x6000, scoped, tag = 'output window, operand 1']
    #allocation13 [shape = 's32[2]{0}', space=sflag, size = 0x8, scoped, tag = 'scoped memory for tpu_custom_call.1']
    #allocation14 [shape = 'u8[24576]{0}', space=vmem, size = 0x6000, scoped, tag = 'output window, operand 2']
    #allocation15 [shape = 'u8[8192]{0}', space=vmem, size = 0x2000, scoped, tag = 'output window, operand 3']
    #allocation16 [shape = 's32[2]{0}', space=sflag, size = 0x8, scoped, tag = 'scoped memory for tpu_custom_call.1']
    %11 = vsyncpa [#allocation7], 0
    %s12 = scalar_lea.sflag [#allocation7], 1
    %13 = vsyncpa %s12, 0
    %14 = vsyncpa [#allocation10], 0
    %s15 = scalar_lea.sflag [#allocation10], 1
    %16 = vsyncpa %s15, 0
    %17 = vsyncpa [#allocation8], 0
    %s18 = scalar_lea.sflag [#allocation8], 1
    %19 = vsyncpa %s18, 0
    %20 = vsyncpa [#allocation13], 0
    %s21 = scalar_lea.sflag [#allocation13], 1
    %22 = vsyncpa %s21, 0
    %23 = vsyncpa [#allocation16], 0
    %s24 = scalar_lea.sflag [#allocation16], 1
    %25 = vsyncpa %s24, 0
    loop: start=0, step=1, limit=4
    $region2: #{tpu_custom_call.1} parent=1 // loop_pre_header
      _
    $region3: #{tpu_custom_call.1} parent=1 // loop_header
      %s27 = sphi 0, %s31
      %p28 = scmp.ge.s32.totalorder %s27, 4
      %s34 = sphi 0, %s53
      %s35 = sphi 0, %s49
      %s36 = sphi 0, %s45
      %s37 = sphi 0, %s34
      %s38 = sphi 0, %s35
      %s39 = sphi 0, %s36
      %s40 = sphi 0, %s37
      %s41 = sphi 0, %s38
      %s42 = sphi 0, %s39
      %s64 = sphi 0, %s66
      %s67 = sphi 0, %s64
      %s68 = sphi 0, %s67
      %s84 = sphi 0, %s68
      %s98 = sphi 0, %s100
      %s101 = sphi 0, %s98
      %s102 = sphi 0, %s101
      %s118 = sphi 0, %s102
      %s126 = sphi 0, %s128
      %s129 = sphi 0, %s126
      %s130 = sphi 0, %s129
      %s146 = sphi 0, %s130
      %s154 = sphi 0, %s156
      %s157 = sphi 0, %s154
      %s158 = sphi 0, %s157
      %s174 = sphi 0, %s158
      %s182 = sphi 0, %s184
      %s185 = sphi 0, %s182
      %s186 = sphi 0, %s185
      %s202 = sphi 0, %s186
      %s210 = sphi 0, %s212
      %s213 = sphi 0, %s210
      %s214 = sphi 0, %s213
      %s230 = sphi 0, %s214
    $region4: #{tpu_custom_call.1} parent=1 // loop_header_branch
      %30 = sbr.rel (%p28) target = $region8
    $region5: #{tpu_custom_call.1} parent=1 // loop_body
      %s32 = ssub.s32 %s27, 1
      %s33 = ssub.s32 %s27, 2
      %s43 = sadd.s32 1, %s36
      %p44 = scmp.ge.s32.totalorder %s43, 1
      %s45 = scalar_select %p44, 0, %s43
      %s46 = sadd.s32 1, %s35
      %s47 = scalar_select %p44, %s46, %s35
      %p48 = scmp.ge.s32.totalorder %s47, 2
      %s49 = scalar_select %p48, 0, %s47
      %s50 = sadd.s32 1, %s34
      %s51 = scalar_select %p48, %s50, %s34
      %p52 = scmp.ge.s32.totalorder %s51, 1
      %s53 = scalar_select %p52, 0, %s51
      %s54 = sadd.s32 %s34, %s36
      %p55 = scmp.lt.s32.totalorder %s54, 0
      %s56 = scalar_select %p55, %s54, 0
      %s57 = sadd.s32 %s53, %s45
      %p58 = scmp.lt.s32.totalorder %s57, 0
      %s59 = scalar_select %p58, %s57, 0
      %s60 = ssub.s32 %s35, %s49
      %s61 = ssub.s32 %s56, %s59
      %s62 = sor.u32 %s60, %s61
      %p63 = scmp.eq.s32.totalorder %s62, 0
      %s65 = sadd.s32 %s64, 1
      %s66 = scalar_select %p63, %s64, %s65
      %p69 = pneg %p63
      %p70 = scmp.eq.s32.totalorder %s27, 1
      %p71 = por %p69, %p70
      %p72 = scmp.ne.s32.totalorder %s64, %s67
      %p73 = scmp.eq.s32.totalorder %s27, 0
      %p74 = por %p72, %p73
      %p75 = scmp.ne.s32.totalorder %s64, %s67
      %p76 = scmp.eq.s32.totalorder %s32, 1
      %p77 = por %p75, %p76
      %p78 = scmp.ne.s32.totalorder %s67, %s68
      %p79 = scmp.eq.s32.totalorder %s32, 0
      %p80 = por %p78, %p79
      %p81 = scmp.ne.s32.totalorder %s67, %s68
      %p82 = scmp.eq.s32.totalorder %s33, 1
      %p83 = por %p81, %p82
      %p85 = scmp.ne.s32.totalorder %s68, %s84
      %p86 = scmp.eq.s32.totalorder %s33, 0
      %p87 = por %p85, %p86
      %s88 = sadd.s32 %s34, %s36
      %p89 = scmp.lt.s32.totalorder %s88, 0
      %s90 = scalar_select %p89, %s88, 0
      %s91 = sadd.s32 %s53, %s45
      %p92 = scmp.lt.s32.totalorder %s91, 0
      %s93 = scalar_select %p92, %s91, 0
      %s94 = ssub.s32 %s35, %s49
      %s95 = ssub.s32 %s90, %s93
      %s96 = sor.u32 %s94, %s95
      %p97 = scmp.eq.s32.totalorder %s96, 0
      %s99 = sadd.s32 %s98, 1
      %s100 = scalar_select %p97, %s98, %s99
      %p103 = pneg %p97
      %p104 = scmp.eq.s32.totalorder %s27, 1
      %p105 = por %p103, %p104
      %p106 = scmp.ne.s32.totalorder %s98, %s101
      %p107 = scmp.eq.s32.totalorder %s27, 0
      %p108 = por %p106, %p107
      %p109 = scmp.ne.s32.totalorder %s98, %s101
      %p110 = scmp.eq.s32.totalorder %s32, 1
      %p111 = por %p109, %p110
      %p112 = scmp.ne.s32.totalorder %s101, %s102
      %p113 = scmp.eq.s32.totalorder %s32, 0
      %p114 = por %p112, %p113
      %p115 = scmp.ne.s32.totalorder %s101, %s102
      %p116 = scmp.eq.s32.totalorder %s33, 1
      %p117 = por %p115, %p116
      %p119 = scmp.ne.s32.totalorder %s102, %s118
      %p120 = scmp.eq.s32.totalorder %s33, 0
      %p121 = por %p119, %p120
      %s122 = ssub.s32 %s34, %s53
      %s123 = ssub.s32 %s35, %s49
      %s124 = sor.u32 %s122, %s123
      %p125 = scmp.eq.s32.totalorder %s124, 0
      %s127 = sadd.s32 %s126, 1
      %s128 = scalar_select %p125, %s126, %s127
      %p131 = pneg %p125
      %p132 = scmp.eq.s32.totalorder %s27, 1
      %p133 = por %p131, %p132
      %p134 = scmp.ne.s32.totalorder %s126, %s129
      %p135 = scmp.eq.s32.totalorder %s27, 0
      %p136 = por %p134, %p135
      %p137 = scmp.ne.s32.totalorder %s126, %s129
      %p138 = scmp.eq.s32.totalorder %s32, 1
      %p139 = por %p137, %p138
      %p140 = scmp.ne.s32.totalorder %s129, %s130
      %p141 = scmp.eq.s32.totalorder %s32, 0
      %p142 = por %p140, %p141
      %p143 = scmp.ne.s32.totalorder %s129, %s130
      %p144 = scmp.eq.s32.totalorder %s33, 1
      %p145 = por %p143, %p144
      %p147 = scmp.ne.s32.totalorder %s130, %s146
      %p148 = scmp.eq.s32.totalorder %s33, 0
      %p149 = por %p147, %p148
      %s150 = ssub.s32 %s34, %s53
      %s151 = ssub.s32 %s35, %s49
      %s152 = sor.u32 %s150, %s151
      %p153 = scmp.eq.s32.totalorder %s152, 0
      %s155 = sadd.s32 %s154, 1
      %s156 = scalar_select %p153, %s154, %s155
      %p159 = pneg %p153
      %p160 = scmp.eq.s32.totalorder %s27, 1
      %p161 = por %p159, %p160
      %p162 = scmp.ne.s32.totalorder %s154, %s157
      %p163 = scmp.eq.s32.totalorder %s27, 0
      %p164 = por %p162, %p163
      %p165 = scmp.ne.s32.totalorder %s154, %s157
      %p166 = scmp.eq.s32.totalorder %s32, 1
      %p167 = por %p165, %p166
      %p168 = scmp.ne.s32.totalorder %s157, %s158
      %p169 = scmp.eq.s32.totalorder %s32, 0
      %p170 = por %p168, %p169
      %p171 = scmp.ne.s32.totalorder %s157, %s158
      %p172 = scmp.eq.s32.totalorder %s33, 1
      %p173 = por %p171, %p172
      %p175 = scmp.ne.s32.totalorder %s158, %s174
      %p176 = scmp.eq.s32.totalorder %s33, 0
      %p177 = por %p175, %p176
      %s178 = ssub.s32 %s34, %s53
      %s179 = ssub.s32 %s35, %s49
      %s180 = sor.u32 %s178, %s179
      %p181 = scmp.eq.s32.totalorder %s180, 0
      %s183 = sadd.s32 %s182, 1
      %s184 = scalar_select %p181, %s182, %s183
      %p187 = pneg %p181
      %p188 = scmp.eq.s32.totalorder %s27, 1
      %p189 = por %p187, %p188
      %p190 = scmp.ne.s32.totalorder %s182, %s185
      %p191 = scmp.eq.s32.totalorder %s27, 0
      %p192 = por %p190, %p191
      %p193 = scmp.ne.s32.totalorder %s182, %s185
      %p194 = scmp.eq.s32.totalorder %s32, 1
      %p195 = por %p193, %p194
      %p196 = scmp.ne.s32.totalorder %s185, %s186
      %p197 = scmp.eq.s32.totalorder %s32, 0
      %p198 = por %p196, %p197
      %p199 = scmp.ne.s32.totalorder %s185, %s186
      %p200 = scmp.eq.s32.totalorder %s33, 1
      %p201 = por %p199, %p200
      %p203 = scmp.ne.s32.totalorder %s186, %s202
      %p204 = scmp.eq.s32.totalorder %s33, 0
      %p205 = por %p203, %p204
      %s206 = ssub.s32 %s34, %s53
      %s207 = ssub.s32 %s35, %s49
      %s208 = sor.u32 %s206, %s207
      %p209 = scmp.eq.s32.totalorder %s208, 0
      %s211 = sadd.s32 %s210, 1
      %s212 = scalar_select %p209, %s210, %s211
      %p215 = pneg %p209
      %p216 = scmp.eq.s32.totalorder %s27, 1
      %p217 = por %p215, %p216
      %p218 = scmp.ne.s32.totalorder %s210, %s213
      %p219 = scmp.eq.s32.totalorder %s27, 0
      %p220 = por %p218, %p219
      %p221 = scmp.ne.s32.totalorder %s210, %s213
      %p222 = scmp.eq.s32.totalorder %s32, 1
      %p223 = por %p221, %p222
      %p224 = scmp.ne.s32.totalorder %s213, %s214
      %p225 = scmp.eq.s32.totalorder %s32, 0
      %p226 = por %p224, %p225
      %p227 = scmp.ne.s32.totalorder %s213, %s214
      %p228 = scmp.eq.s32.totalorder %s33, 1
      %p229 = por %p227, %p228
      %p231 = scmp.ne.s32.totalorder %s214, %s230
      %p232 = scmp.eq.s32.totalorder %s33, 0
      %p233 = por %p231, %p232
      %p234 = scmp.le.s32.totalorder 1, %s27
      %p235 = scmp.lt.s32.totalorder %s27, 3
      %p236 = pnand %p234, %p235
      %p237 = pneg %p236
      // Predicated region
      $region9: #{tpu_custom_call.1} parent=5 // pred_check
        _
      $region10: #{tpu_custom_call.1} parent=5 // pred_check_branch
        %239 = sbr.rel (%p236) target = $region12
      $region11: #{tpu_custom_call.1} parent=5 // pred_region
        %s240 = ssub.s32 %s27, 1
      $region12: #{tpu_custom_call.1} parent=5 // pred_fallthru
        _
      %p241 = scmp.lt.s32.totalorder %s27, 2
      // Predicated region
      $region13: #{tpu_custom_call.1} parent=5 // pred_check
        %p242 = pneg %p241
      $region14: #{tpu_custom_call.1} parent=5 // pred_check_branch
        %244 = sbr.rel (%p242) target = $region16
      $region15: #{tpu_custom_call.1} parent=5 // pred_region
        // Predicated region
        $region17: #{tpu_custom_call.1} parent=15 // pred_check
          %p245 = pneg %p74
        $region18: #{tpu_custom_call.1} parent=15 // pred_check_branch
          %247 = sbr.rel (%p245) target = $region20
        $region19: #{tpu_custom_call.1} parent=15 // pred_region
          %s248 = sand.u32 %s64, 1
          %s249 = scalar_lea.sflag [#allocation7], %s248
          %s250 = sand.u32 %s64, 1
          %s251 = smul.addr %s250, 24
          %s252 = scalar_lea.vmem [#allocation6], %s251
          %s253 = sadd.s32 %s34, %s36
          %p254 = scmp.lt.s32.totalorder %s253, 0
          %s255 = scalar_select %p254, %s253, 0
          %257 = vsyncadd %s249, 0
          %s258 = smul.addr %s35, 3
          %s259 = sadd.s32 %s255, %s258
          %s260 = smul.addr %s259, 8
          %s261 = scalar_lea.hbm %s0, %s260
          %s262 = sshll.u32 %s261, 4
          %s263 = int_to_ptr.hbm [resolvable:$true] %s262
          %s264 = sshll.u32 %s252, 4
          %s265 = int_to_ptr.vmem [resolvable:$true] %s264
          %270 = dma.hbm_to_vmem [thread:$0]  %s263, 384, %s265, %s249, 128, 128, 8
        $region20: #{tpu_custom_call.1} parent=15 // pred_fallthru
          _
        // Predicated region
        $region21: #{tpu_custom_call.1} parent=15 // pred_check
          %p271 = pneg %p108
        $region22: #{tpu_custom_call.1} parent=15 // pred_check_branch
          %273 = sbr.rel (%p271) target = $region24
        $region23: #{tpu_custom_call.1} parent=15 // pred_region
          %s274 = sand.u32 %s98, 1
          %s275 = scalar_lea.sflag [#allocation10], %s274
          %s276 = sand.u32 %s98, 1
          %s277 = smul.addr %s276, 8
          %s278 = scalar_lea.vmem [#allocation9], %s277
          %s279 = sadd.s32 %s34, %s36
          %p280 = scmp.lt.s32.totalorder %s279, 0
          %s281 = scalar_select %p280, %s279, 0
          %283 = vsyncadd %s275, 0
          %s284 = sadd.s32 %s281, %s35
          %s285 = smul.addr %s284, 8
          %s286 = scalar_lea.hbm %s1, %s285
          %s288 = sshll.u32 %s286, 4
          %s289 = int_to_ptr.hbm [resolvable:$true] %s288
          %s290 = sshll.u32 %s278, 4
          %s291 = int_to_ptr.vmem [resolvable:$true] %s290
          %293 = dma.hbm_to_vmem [thread:$0]  %s289, 128, %s291, %s275
        $region24: #{tpu_custom_call.1} parent=15 // pred_fallthru
          _
      $region16: #{tpu_custom_call.1} parent=5 // pred_fallthru
        _
      %p294 = scmp.le.s32.totalorder 1, %s27
      %p295 = scmp.lt.s32.totalorder %s27, 3
      %p296 = pnand %p294, %p295
      %p297 = pneg %p296
      // Predicated region
      $region25: #{tpu_custom_call.1} parent=5 // pred_check
        _
      $region26: #{tpu_custom_call.1} parent=5 // pred_check_branch
        %299 = sbr.rel (%p296) target = $region28
      $region27: #{tpu_custom_call.1} parent=5 // pred_region
        %s300 = ssub.s32 %s27, 1
        %s301 = sand.u32 %s67, 1
        %s302 = scalar_lea.sflag [#allocation7], %s301
        %s303 = sand.u32 %s67, 1
        %s304 = smul.addr %s303, 24
        %s305 = scalar_lea.vmem [#allocation6], %s304
        // Predicated region
        $region29: #{tpu_custom_call.1} parent=27 // pred_check
          %p306 = pneg %p80
        $region30: #{tpu_custom_call.1} parent=27 // pred_check_branch
          %308 = sbr.rel (%p306) target = $region32
        $region31: #{tpu_custom_call.1} parent=27 // pred_region
          %310 = dma.done %s302, 384
        $region32: #{tpu_custom_call.1} parent=27 // pred_fallthru
          _
        %s311 = sand.u32 %s101, 1
        %s312 = scalar_lea.sflag [#allocation10], %s311
        %s313 = sand.u32 %s101, 1
        %s314 = smul.addr %s313, 8
        %s315 = scalar_lea.vmem [#allocation9], %s314
        // Predicated region
        $region33: #{tpu_custom_call.1} parent=27 // pred_check
          %p316 = pneg %p114
        $region34: #{tpu_custom_call.1} parent=27 // pred_check_branch
          %318 = sbr.rel (%p316) target = $region36
        $region35: #{tpu_custom_call.1} parent=27 // pred_region
          %320 = dma.done %s312, 128
        $region36: #{tpu_custom_call.1} parent=27 // pred_fallthru
          _
        %s321 = sand.u32 %s67, 1
        %s322 = scalar_lea.sflag [#allocation7], %s321
        %s323 = sand.u32 %s67, 1
        %s324 = smul.addr %s323, 24
        %s325 = scalar_lea.vmem [#allocation6], %s324
        %p326 = pneg %p80
        %p327 = pneg %p77
        %s328 = sand.u32 %s101, 1
        %s329 = scalar_lea.sflag [#allocation10], %s328
        %s330 = sand.u32 %s101, 1
        %s331 = smul.addr %s330, 8
        %s332 = scalar_lea.vmem [#allocation9], %s331
        %p333 = pneg %p114
        %p334 = pneg %p111
        %p335 = pneg %p142
        %p336 = pneg %p139
        %s337 = sand.u32 %s129, 1
        %s338 = scalar_lea.sflag [#allocation8], %s337
        %s339 = sand.u32 %s129, 1
        %s340 = smul.addr %s339, 24
        %s341 = scalar_lea.vmem [#allocation11], %s340
        %p342 = pneg %p170
        %p343 = pneg %p167
        %s344 = sand.u32 %s32, 1
        %s345 = scalar_lea.sflag [#allocation13], %s344
        %s346 = sand.u32 %s157, 1
        %s347 = smul.addr %s346, 24
        %s348 = scalar_lea.vmem [#allocation12], %s347
        %p349 = pneg %p198
        %p350 = pneg %p195
        %s351 = sand.u32 %s32, 1
        %s352 = scalar_lea.sflag [#allocation13], %s351
        %s353 = sand.u32 %s185, 1
        %s354 = smul.addr %s353, 24
        %s355 = scalar_lea.vmem [#allocation14], %s354
        %p356 = pneg %p226
        %p357 = pneg %p223
        %s358 = sand.u32 %s213, 1
        %s359 = scalar_lea.sflag [#allocation16], %s358
        %s360 = sand.u32 %s213, 1
        %s361 = smul.addr %s360, 8
        %s362 = scalar_lea.vmem [#allocation15], %s361
        %s363 = sadd.s32 %s37, %s39
        %p364 = scmp.lt.s32.totalorder %s363, 0
        %s365 = scalar_select %p364, %s363, 0
        %s366 = sadd.s32 %s37, %s39
        %p367 = scmp.lt.s32.totalorder %s366, 0
        %s368 = scalar_select %p367, %s366, 0
        %s369 = sadd.s32 %s37, %s39
        %p370 = scmp.eq.s32.totalorder %s39, 0
        // Predicated region
        $region37: #{tpu_custom_call.1} parent=27 // pred_check
          %p371 = pneg %p370
        $region38: #{tpu_custom_call.1} parent=27 // pred_check_branch
          %373 = sbr.rel (%p371) target = $region40
        $region39: #{tpu_custom_call.1} parent=27 // pred_region
          %374 = vst [vmem:[#allocation2] sm:$0xff] 0.0
          %375 = vst [vmem:[#allocation2 + $0x8] sm:$0xff] 0.0
          %376 = vst [vmem:[#allocation2 + $0x10] sm:$0xff] 0.0
          %377 = vst [vmem:[#allocation3] sm:$0xff] 0.0
          %378 = vst [vmem:[#allocation3 + $0x8] sm:$0xff] 0.0
          %379 = vst [vmem:[#allocation3 + $0x10] sm:$0xff] 0.0
          %380 = vst [vmem:[#allocation4] sm:$0xff] 0.0
          %381 = vst [vmem:[#allocation4 + $0x8] sm:$0xff] 0.0
          %382 = vst [vmem:[#allocation4 + $0x10] sm:$0xff] 0.0
          %383 = vst [vmem:[#allocation5] sm:$0xff] 0.0
        $region40: #{tpu_custom_call.1} parent=27 // pred_fallthru
          _
        %p384 = scmp.lt.s32.totalorder %s369, 0
        // Predicated region
        $region41: #{tpu_custom_call.1} parent=27 // pred_check
          %p385 = pneg %p384
        $region42: #{tpu_custom_call.1} parent=27 // pred_check_branch
          %387 = sbr.rel (%p385) target = $region44
        $region43: #{tpu_custom_call.1} parent=27 // pred_region
          %v388 = vld [vmem:[%s315] sm:$0xff]
          %v389 = vld [vmem:[%s305] sm:$0xff]
          %s390 = scalar_lea.vmem %s305, 8 [#allocation6]
          %v391 = vld [vmem:[%s390] sm:$0xff]
          %s392 = scalar_lea.vmem %s305, 16 [#allocation6]
          %v393 = vld [vmem:[%s392] sm:$0xff]
          %v394 = vmax.f32 %v389, %v391
          %v395 = vmax.f32 %v394, %v393
          %v396 = vsub.f32 %v389, %v395
          %v397 = vmul.f32 %v396, 1.442695
          %v398 = vpow.pop %v397
          %v399 = vsub.f32 %v391, %v395
          %v400 = vmul.f32 %v399, 1.442695
          %v401 = vpow.pop %v400
          %v402 = vsub.f32 %v393, %v395
          %v403 = vmul.f32 %v402, 1.442695
          %v404 = vpow.pop %v403
          %v405 = vadd.f32 %v398, %v401
          %v406 = vadd.f32 %v405, %v404
          %v407 = vrcp.pop %v406
          %v408 = vmul.f32 %v406, %v407
          %v409 = vsub.f32 1.0, %v408
          %v410 = vmul.f32 %v407, %v409
          %v411 = vadd.f32 %v407, %v410
          %vm412 = vweird.f32 %v406
          %vm413 = vweird.f32 %v407
          %vm414 = vmor %vm412, %vm413
          %v415 = vsel %vm414, %v407, %v411
          %v416 = vand.u32 2147483647, %v406
          %vm417 = vcmp.eq.f32.partialorder %v416, 8.507059e+37
          %v418 = vand.u32 %v406, 2147483648
          %v419 = vor.u32 1.1754944e-38, %v418
          %v420 = vsel %vm417, %v419, %v415
          %v421 = vmul.f32 %v398, %v420
          %v422 = vmul.f32 %v401, %v420
          %v423 = vmul.f32 %v404, %v420
          %vm424 = vcmp.eq.s32.totalorder %v388, 0
          %v425 = vsel %vm424, 1, 0
          %v426 = vcvt.s32.f32 %v425
          %vm427 = vcmp.eq.s32.totalorder %v388, 1
          %v428 = vsel %vm427, 1, 0
          %v429 = vcvt.s32.f32 %v428
          %vm430 = vcmp.eq.s32.totalorder %v388, 2
          %v431 = vsel %vm430, 1, 0
          %v432 = vcvt.s32.f32 %v431
          %v433 = vlog2.pop %v406
          %v434 = vmul.f32 %v433, 0.6931472
          %v435 = vadd.f32 %v395, %v434
          %v436 = vmul.f32 %v389, %v426
          %v437 = vmul.f32 %v391, %v429
          %v438 = vadd.f32 %v436, %v437
          %v439 = vmul.f32 %v393, %v432
          %v440 = vadd.f32 %v438, %v439
          %v441 = vsub.f32 %v435, %v440
          %v442 = vld [vmem:[#allocation2] sm:$0xff]
          %v443 = vmul.f32 %v421, %v426
          %v444 = vadd.f32 %v443, 0.0
          %v445 = vadd.f32 %v442, %v444
          %446 = vst [vmem:[#allocation2] sm:$0xff] %v445
          %v447 = vld [vmem:[#allocation3] sm:$0xff]
          %v448 = vadd.f32 %v421, 0.0
          %v449 = vadd.f32 %v447, %v448
          %450 = vst [vmem:[#allocation3] sm:$0xff] %v449
          %v451 = vld [vmem:[#allocation4] sm:$0xff]
          %v452 = vadd.f32 %v426, 0.0
          %v453 = vadd.f32 %v451, %v452
          %454 = vst [vmem:[#allocation4] sm:$0xff] %v453
          %v455 = vld [vmem:[#allocation2 + $0x8] sm:$0xff]
          %v456 = vmul.f32 %v422, %v429
          %v457 = vadd.f32 %v456, 0.0
          %v458 = vadd.f32 %v455, %v457
          %459 = vst [vmem:[#allocation2 + $0x8] sm:$0xff] %v458
          %v460 = vld [vmem:[#allocation3 + $0x8] sm:$0xff]
          %v461 = vadd.f32 %v422, 0.0
          %v462 = vadd.f32 %v460, %v461
          %463 = vst [vmem:[#allocation3 + $0x8] sm:$0xff] %v462
          %v464 = vld [vmem:[#allocation4 + $0x8] sm:$0xff]
          %v465 = vadd.f32 %v429, 0.0
          %v466 = vadd.f32 %v464, %v465
          %467 = vst [vmem:[#allocation4 + $0x8] sm:$0xff] %v466
          %v468 = vld [vmem:[#allocation2 + $0x10] sm:$0xff]
          %v469 = vmul.f32 %v423, %v432
          %v470 = vadd.f32 %v469, 0.0
          %v471 = vadd.f32 %v468, %v470
          %472 = vst [vmem:[#allocation2 + $0x10] sm:$0xff] %v471
          %v473 = vld [vmem:[#allocation3 + $0x10] sm:$0xff]
          %v474 = vadd.f32 %v423, 0.0
          %v475 = vadd.f32 %v473, %v474
          %476 = vst [vmem:[#allocation3 + $0x10] sm:$0xff] %v475
          %v477 = vld [vmem:[#allocation4 + $0x10] sm:$0xff]
          %v478 = vadd.f32 %v432, 0.0
          %v479 = vadd.f32 %v477, %v478
          %480 = vst [vmem:[#allocation4 + $0x10] sm:$0xff] %v479
          %v481 = vld [vmem:[#allocation5] sm:$0xff]
          %v482 = vadd.f32 %v441, 0.0
          %v483 = vadd.f32 %v481, %v482
          %484 = vst [vmem:[#allocation5] sm:$0xff] %v483
        $region44: #{tpu_custom_call.1} parent=27 // pred_fallthru
          _
        %p485 = scmp.ge.s32.totalorder %s369, 0
        // Predicated region
        $region45: #{tpu_custom_call.1} parent=27 // pred_check
          %p486 = pneg %p485
        $region46: #{tpu_custom_call.1} parent=27 // pred_check_branch
          %488 = sbr.rel (%p486) target = $region48
        $region47: #{tpu_custom_call.1} parent=27 // pred_region
          %v489 = vld [vmem:[%s315] sm:$0xff]
          %v490 = vld [vmem:[%s305] sm:$0xff]
          %s491 = scalar_lea.vmem %s305, 8 [#allocation6]
          %v492 = vld [vmem:[%s491] sm:$0xff]
          %s493 = scalar_lea.vmem %s305, 16 [#allocation6]
          %v494 = vld [vmem:[%s493] sm:$0xff]
          %v495 = vlaneseq
          %v496 = vshrl.u32 %v495, 7
          %v497 = vlaneseq
          %v498 = vand.u32 %v497, 127
          %s499 = smul.u32 %s369, 8
          %v500 = vstv %s499
          %v501 = vadd.s32 %v500, %v496
          %v502 = vmul.u32 %v501, 128
          %v503 = vadd.s32 %v502, %v498
          %vm504 = vcmp.lt.s32.totalorder %v503, 256
          %v505 = vsel %vm504, 1, 0
          %v506 = vcvt.s32.f32 %v505
          %v507 = vsel %vm504, %v490, 0.0
          %v508 = vsel %vm504, %v492, 0.0
          %v509 = vsel %vm504, %v494, 0.0
          %v510 = vmax.f32 %v507, %v508
          %v511 = vmax.f32 %v510, %v509
          %v512 = vsub.f32 %v507, %v511
          %v513 = vmul.f32 %v512, 1.442695
          %v514 = vpow.pop %v513
          %v515 = vsub.f32 %v508, %v511
          %v516 = vmul.f32 %v515, 1.442695
          %v517 = vpow.pop %v516
          %v518 = vsub.f32 %v509, %v511
          %v519 = vmul.f32 %v518, 1.442695
          %v520 = vpow.pop %v519
          %v521 = vadd.f32 %v514, %v517
          %v522 = vadd.f32 %v521, %v520
          %v523 = vrcp.pop %v522
          %v524 = vmul.f32 %v522, %v523
          %v525 = vsub.f32 1.0, %v524
          %v526 = vmul.f32 %v523, %v525
          %v527 = vadd.f32 %v523, %v526
          %vm528 = vweird.f32 %v522
          %vm529 = vweird.f32 %v523
          %vm530 = vmor %vm528, %vm529
          %v531 = vsel %vm530, %v523, %v527
          %v532 = vand.u32 2147483647, %v522
          %vm533 = vcmp.eq.f32.partialorder %v532, 8.507059e+37
          %v534 = vand.u32 %v522, 2147483648
          %v535 = vor.u32 1.1754944e-38, %v534
          %v536 = vsel %vm533, %v535, %v531
          %v537 = vmul.f32 %v514, %v536
          %v538 = vmul.f32 %v517, %v536
          %v539 = vmul.f32 %v520, %v536
          %vm540 = vcmp.eq.s32.totalorder %v489, 0
          %v541 = vsel %vm540, 1, 0
          %v542 = vcvt.s32.f32 %v541
          %vm543 = vcmp.eq.s32.totalorder %v489, 1
          %v544 = vsel %vm543, 1, 0
          %v545 = vcvt.s32.f32 %v544
          %vm546 = vcmp.eq.s32.totalorder %v489, 2
          %v547 = vsel %vm546, 1, 0
          %v548 = vcvt.s32.f32 %v547
          %v549 = vmul.f32 %v542, %v506
          %v550 = vmul.f32 %v545, %v506
          %v551 = vmul.f32 %v548, %v506
          %v552 = vlog2.pop %v522
          %v553 = vmul.f32 %v552, 0.6931472
          %v554 = vadd.f32 %v511, %v553
          %v555 = vmul.f32 %v507, %v549
          %v556 = vmul.f32 %v508, %v550
          %v557 = vadd.f32 %v555, %v556
          %v558 = vadd.f32 %v549, %v550
          %v559 = vmul.f32 %v509, %v551
          %v560 = vadd.f32 %v557, %v559
          %v561 = vadd.f32 %v558, %v551
          %v562 = vmul.f32 %v554, %v561
          %v563 = vsub.f32 %v562, %v560
          %v564 = vld [vmem:[#allocation2] sm:$0xff]
          %v565 = vmul.f32 %v537, %v549
          %v566 = vadd.f32 %v565, 0.0
          %v567 = vadd.f32 %v564, %v566
          %568 = vst [vmem:[#allocation2] sm:$0xff] %v567
          %v569 = vmul.f32 %v537, %v506
          %v570 = vld [vmem:[#allocation3] sm:$0xff]
          %v571 = vadd.f32 %v569, 0.0
          %v572 = vadd.f32 %v570, %v571
          %573 = vst [vmem:[#allocation3] sm:$0xff] %v572
          %v574 = vld [vmem:[#allocation4] sm:$0xff]
          %v575 = vadd.f32 %v549, 0.0
          %v576 = vadd.f32 %v574, %v575
          %577 = vst [vmem:[#allocation4] sm:$0xff] %v576
          %v578 = vld [vmem:[#allocation2 + $0x8] sm:$0xff]
          %v579 = vmul.f32 %v538, %v550
          %v580 = vadd.f32 %v579, 0.0
          %v581 = vadd.f32 %v578, %v580
          %582 = vst [vmem:[#allocation2 + $0x8] sm:$0xff] %v581
          %v583 = vmul.f32 %v538, %v506
          %v584 = vld [vmem:[#allocation3 + $0x8] sm:$0xff]
          %v585 = vadd.f32 %v583, 0.0
          %v586 = vadd.f32 %v584, %v585
          %587 = vst [vmem:[#allocation3 + $0x8] sm:$0xff] %v586
          %v588 = vld [vmem:[#allocation4 + $0x8] sm:$0xff]
          %v589 = vadd.f32 %v550, 0.0
          %v590 = vadd.f32 %v588, %v589
          %591 = vst [vmem:[#allocation4 + $0x8] sm:$0xff] %v590
          %v592 = vld [vmem:[#allocation2 + $0x10] sm:$0xff]
          %v593 = vmul.f32 %v539, %v551
          %v594 = vadd.f32 %v593, 0.0
          %v595 = vadd.f32 %v592, %v594
          %596 = vst [vmem:[#allocation2 + $0x10] sm:$0xff] %v595
          %v597 = vmul.f32 %v539, %v506
          %v598 = vld [vmem:[#allocation3 + $0x10] sm:$0xff]
          %v599 = vadd.f32 %v597, 0.0
          %v600 = vadd.f32 %v598, %v599
          %601 = vst [vmem:[#allocation3 + $0x10] sm:$0xff] %v600
          %v602 = vld [vmem:[#allocation4 + $0x10] sm:$0xff]
          %v603 = vadd.f32 %v551, 0.0
          %v604 = vadd.f32 %v602, %v603
          %605 = vst [vmem:[#allocation4 + $0x10] sm:$0xff] %v604
          %v606 = vld [vmem:[#allocation5] sm:$0xff]
          %v607 = vadd.f32 %v563, 0.0
          %v608 = vadd.f32 %v606, %v607
          %609 = vst [vmem:[#allocation5] sm:$0xff] %v608
        $region48: #{tpu_custom_call.1} parent=27 // pred_fallthru
          _
        // Predicated region
        $region49: #{tpu_custom_call.1} parent=27 // pred_check
          %p610 = pneg %p370
        $region50: #{tpu_custom_call.1} parent=27 // pred_check_branch
          %612 = sbr.rel (%p610) target = $region52
        $region51: #{tpu_custom_call.1} parent=27 // pred_region
          %v613 = vld [vmem:[#allocation2] sm:$0xff]
          %v614 = vld [vmem:[#allocation2 + $0x8] sm:$0xff]
          %v615 = vld [vmem:[#allocation2 + $0x10] sm:$0xff]
          %616 = vst [vmem:[%s341] sm:$0xff] %v613
          %617 = vst [vmem:[%s341 + $0x8] sm:$0xff] %v614
          %618 = vst [vmem:[%s341 + $0x10] sm:$0xff] %v615
          %v619 = vld [vmem:[#allocation3] sm:$0xff]
          %v620 = vld [vmem:[#allocation3 + $0x8] sm:$0xff]
          %v621 = vld [vmem:[#allocation3 + $0x10] sm:$0xff]
          %622 = vst [vmem:[%s348] sm:$0xff] %v619
          %623 = vst [vmem:[%s348 + $0x8] sm:$0xff] %v620
          %624 = vst [vmem:[%s348 + $0x10] sm:$0xff] %v621
          %v625 = vld [vmem:[#allocation4] sm:$0xff]
          %v626 = vld [vmem:[#allocation4 + $0x8] sm:$0xff]
          %v627 = vld [vmem:[#allocation4 + $0x10] sm:$0xff]
          %628 = vst [vmem:[%s355] sm:$0xff] %v625
          %629 = vst [vmem:[%s355 + $0x8] sm:$0xff] %v626
          %630 = vst [vmem:[%s355 + $0x10] sm:$0xff] %v627
          %v631 = vld [vmem:[#allocation5] sm:$0xff]
          %632 = vst [vmem:[%s362] sm:$0xff] %v631
        $region52: #{tpu_custom_call.1} parent=27 // pred_fallthru
          _
        %s633 = sand.u32 %s129, 1
        %s634 = scalar_lea.sflag [#allocation8], %s633
        %s635 = sand.u32 %s129, 1
        %s636 = smul.addr %s635, 24
        %s637 = scalar_lea.vmem [#allocation11], %s636
        %s638 = sand.u32 %s32, 1
        %s639 = scalar_lea.sflag [#allocation13], %s638
        %s640 = sand.u32 %s157, 1
        %s641 = smul.addr %s640, 24
        %s642 = scalar_lea.vmem [#allocation12], %s641
        %s643 = sand.u32 %s32, 1
        %s644 = scalar_lea.sflag [#allocation13], %s643
        %s645 = sand.u32 %s185, 1
        %s646 = smul.addr %s645, 24
        %s647 = scalar_lea.vmem [#allocation14], %s646
        %s648 = sand.u32 %s213, 1
        %s649 = scalar_lea.sflag [#allocation16], %s648
        %s650 = sand.u32 %s213, 1
        %s651 = smul.addr %s650, 8
        %s652 = scalar_lea.vmem [#allocation15], %s651
        // Predicated region
        $region53: #{tpu_custom_call.1} parent=27 // pred_check
          %p653 = pneg %p139
        $region54: #{tpu_custom_call.1} parent=27 // pred_check_branch
          %655 = sbr.rel (%p653) target = $region56
        $region55: #{tpu_custom_call.1} parent=27 // pred_region
          %657 = vsyncadd %s634, 0
          %s658 = smul.addr %s38, 3
          %s659 = smul.addr %s37, 6
          %s660 = sadd.s32 %s658, %s659
          %s661 = smul.addr %s660, 8
          %s662 = scalar_lea.hbm %s2, %s661
          %s663 = sshll.u32 %s637, 4
          %s664 = int_to_ptr.vmem [resolvable:$true] %s663
          %s665 = sshll.u32 %s662, 4
          %s666 = int_to_ptr.hbm [resolvable:$true] %s665
          %671 = dma.vmem_to_hbm [thread:$0]  %s664, 384, %s666, %s634, 128, 128, 8
        $region56: #{tpu_custom_call.1} parent=27 // pred_fallthru
          _
        // Predicated region
        $region57: #{tpu_custom_call.1} parent=27 // pred_check
          %p672 = pneg %p167
        $region58: #{tpu_custom_call.1} parent=27 // pred_check_branch
          %674 = sbr.rel (%p672) target = $region60
        $region59: #{tpu_custom_call.1} parent=27 // pred_region
          %676 = vsyncadd %s639, 0
          %s677 = smul.addr %s38, 3
          %s678 = smul.addr %s37, 6
          %s679 = sadd.s32 %s677, %s678
          %s680 = smul.addr %s679, 8
          %s681 = scalar_lea.hbm %s3, %s680
          %s682 = sshll.u32 %s642, 4
          %s683 = int_to_ptr.vmem [resolvable:$true] %s682
          %s684 = sshll.u32 %s681, 4
          %s685 = int_to_ptr.hbm [resolvable:$true] %s684
          %690 = dma.vmem_to_hbm [thread:$0]  %s683, 384, %s685, %s639, 128, 128, 8
        $region60: #{tpu_custom_call.1} parent=27 // pred_fallthru
          _
        // Predicated region
        $region61: #{tpu_custom_call.1} parent=27 // pred_check
          %p691 = pneg %p195
        $region62: #{tpu_custom_call.1} parent=27 // pred_check_branch
          %693 = sbr.rel (%p691) target = $region64
        $region63: #{tpu_custom_call.1} parent=27 // pred_region
          %695 = vsyncadd %s644, 0
          %s696 = smul.addr %s38, 3
          %s697 = smul.addr %s37, 6
          %s698 = sadd.s32 %s696, %s697
          %s699 = smul.addr %s698, 8
          %s700 = scalar_lea.hbm %s4, %s699
          %s701 = sshll.u32 %s647, 4
          %s702 = int_to_ptr.vmem [resolvable:$true] %s701
          %s703 = sshll.u32 %s700, 4
          %s704 = int_to_ptr.hbm [resolvable:$true] %s703
          %709 = dma.vmem_to_hbm [thread:$0]  %s702, 384, %s704, %s644, 128, 128, 8
        $region64: #{tpu_custom_call.1} parent=27 // pred_fallthru
          _
        // Predicated region
        $region65: #{tpu_custom_call.1} parent=27 // pred_check
          %p710 = pneg %p223
        $region66: #{tpu_custom_call.1} parent=27 // pred_check_branch
          %712 = sbr.rel (%p710) target = $region68
        $region67: #{tpu_custom_call.1} parent=27 // pred_region
          %714 = vsyncadd %s649, 0
          %s715 = smul.addr %s37, 2
          %s716 = sadd.s32 %s38, %s715
          %s717 = smul.addr %s716, 8
          %s718 = scalar_lea.hbm %s5, %s717
          %s720 = sshll.u32 %s652, 4
          %s721 = int_to_ptr.vmem [resolvable:$true] %s720
          %s722 = sshll.u32 %s718, 4
          %s723 = int_to_ptr.hbm [resolvable:$true] %s722
          %725 = dma.vmem_to_hbm [thread:$0]  %s721, 128, %s723, %s649
        $region68: #{tpu_custom_call.1} parent=27 // pred_fallthru
          _
      $region28: #{tpu_custom_call.1} parent=5 // pred_fallthru
        _
      %p726 = scmp.le.s32.totalorder 2, %s27
      // Predicated region
      $region69: #{tpu_custom_call.1} parent=5 // pred_check
        %p727 = pneg %p726
      $region70: #{tpu_custom_call.1} parent=5 // pred_check_branch
        %729 = sbr.rel (%p727) target = $region72
      $region71: #{tpu_custom_call.1} parent=5 // pred_region
        %s730 = ssub.s32 %s27, 2
        // Predicated region
        $region73: #{tpu_custom_call.1} parent=71 // pred_check
          %p731 = pneg %p145
        $region74: #{tpu_custom_call.1} parent=71 // pred_check_branch
          %733 = sbr.rel (%p731) target = $region76
        $region75: #{tpu_custom_call.1} parent=71 // pred_region
          %s734 = sand.u32 %s130, 1
          %s735 = scalar_lea.sflag [#allocation8], %s734
          %s736 = sand.u32 %s130, 1
          %s737 = smul.addr %s736, 24
          %s738 = scalar_lea.vmem [#allocation11], %s737
          %740 = dma.done %s735, 384
        $region76: #{tpu_custom_call.1} parent=71 // pred_fallthru
          _
        // Predicated region
        $region77: #{tpu_custom_call.1} parent=71 // pred_check
          %p741 = pneg %p173
        $region78: #{tpu_custom_call.1} parent=71 // pred_check_branch
          %743 = sbr.rel (%p741) target = $region80
        $region79: #{tpu_custom_call.1} parent=71 // pred_region
          %s744 = sand.u32 %s33, 1
          %s745 = scalar_lea.sflag [#allocation13], %s744
          %s746 = sand.u32 %s158, 1
          %s747 = smul.addr %s746, 24
          %s748 = scalar_lea.vmem [#allocation12], %s747
          %750 = dma.done %s745, 384
        $region80: #{tpu_custom_call.1} parent=71 // pred_fallthru
          _
        // Predicated region
        $region81: #{tpu_custom_call.1} parent=71 // pred_check
          %p751 = pneg %p201
        $region82: #{tpu_custom_call.1} parent=71 // pred_check_branch
          %753 = sbr.rel (%p751) target = $region84
        $region83: #{tpu_custom_call.1} parent=71 // pred_region
          %s754 = sand.u32 %s33, 1
          %s755 = scalar_lea.sflag [#allocation13], %s754
          %s756 = sand.u32 %s186, 1
          %s757 = smul.addr %s756, 24
          %s758 = scalar_lea.vmem [#allocation14], %s757
          %760 = dma.done %s755, 384
        $region84: #{tpu_custom_call.1} parent=71 // pred_fallthru
          _
        // Predicated region
        $region85: #{tpu_custom_call.1} parent=71 // pred_check
          %p761 = pneg %p229
        $region86: #{tpu_custom_call.1} parent=71 // pred_check_branch
          %763 = sbr.rel (%p761) target = $region88
        $region87: #{tpu_custom_call.1} parent=71 // pred_region
          %s764 = sand.u32 %s214, 1
          %s765 = scalar_lea.sflag [#allocation16], %s764
          %s766 = sand.u32 %s214, 1
          %s767 = smul.addr %s766, 8
          %s768 = scalar_lea.vmem [#allocation15], %s767
          %770 = dma.done %s765, 128
        $region88: #{tpu_custom_call.1} parent=71 // pred_fallthru
          _
      $region72: #{tpu_custom_call.1} parent=5 // pred_fallthru
        _
    $region6: #{tpu_custom_call.1} parent=1 // loop_footer
      %s31 = sadd.s32 1, %s27
    $region7: #{tpu_custom_call.1} parent=1 // loop_footer_branch
      %26 = sbr.rel target = $region3
    $region8: #{tpu_custom_call.1} parent=1 // loop_exit
      _
    %771 = vsyncpa [#allocation7], 1
    %s772 = scalar_lea.sflag [#allocation7], 1
    %773 = vsyncpa %s772, 1
    %774 = vsyncpa [#allocation10], 1
    %s775 = scalar_lea.sflag [#allocation10], 1
    %776 = vsyncpa %s775, 1
    %777 = vsyncpa [#allocation8], 1
    %s778 = scalar_lea.sflag [#allocation8], 1
    %779 = vsyncpa %s778, 1
    %780 = vsyncpa [#allocation13], 1
    %s781 = scalar_lea.sflag [#allocation13], 1
    %782 = vsyncpa %s781, 1
    %783 = vsyncpa [#allocation16], 1
    %s784 = scalar_lea.sflag [#allocation16], 1
    %785 = vsyncpa %s784, 1

</llo_original>
